<compile_context>
chip_gen: v7x
topology: tpu7x:2x2x1
jax: 0.10.0
libtpu: 0.0.40
codegen_flags: <defaults>
</compile_context>

<pallas_src>
import jax
import jax.numpy as jnp
from jax import lax
from jax.experimental import pallas as pl
from jax.experimental.pallas import tpu as pltpu


PAD_ID = 0

# Set to jnp.bfloat16 on v6e / v7x for MXU throughput (accumulation stays f32
# via preferred_element_type).  Default float32 preserves exact reference
# semantics.
MATMUL_DTYPE = jnp.float32


def _cast(x):
    return x.astype(MATMUL_DTYPE)


# ----------------------------------------------------------------------------
# Kernel 1: one BiLSTM layer (both directions in one pallas_call).
#
# Grid = (direction, time_chunk).  The input is the precomputed projection
#   xp[d, t, b, :] = x[t, b, :] @ W_ih[d] + b[d]        (shape [2, T, B, 4H])
# so the kernel only does the serial part: gates = xp_t + h_prev @ W_hh[d].
# The backward direction is handled purely through reversed index_maps and a
# reversed in-chunk walk; the output is direction-major [2, T, B, H].
# Gate column order matches PyTorch nn.LSTM: i | f | g | o.
# ----------------------------------------------------------------------------
def _bilstm_layer_kernel(xp_ref, whh_ref, out_ref, h_scr, c_scr):
    d = pl.program_id(0)          # 0 = forward, 1 = backward
    chunk = pl.program_id(1)
    Tc = xp_ref.shape[0]
    H = out_ref.shape[-1]

    # Reset this direction's recurrent state at the first chunk.
    @pl.when(chunk == 0)
    def _():
        h_scr[d] = jnp.zeros(h_scr.shape[1:], h_scr.dtype)
        c_scr[d] = jnp.zeros(c_scr.shape[1:], c_scr.dtype)

    whh = _cast(whh_ref[...])     # [H, 4H] — hoisted out of the time loop

    def step(s, carry):
        h, c = carry
        # forward: local = s ; backward: local = Tc - 1 - s
        local = s + d * (Tc - 1 - 2 * s)
        gates = xp_ref[local] + jnp.dot(_cast(h), whh,
                                        preferred_element_type=jnp.float32)
        i_g = jax.nn.sigmoid(gates[:, 0 * H:1 * H])
        f_g = jax.nn.sigmoid(gates[:, 1 * H:2 * H])
        g_g = jnp.tanh(gates[:, 2 * H:3 * H])
        o_g = jax.nn.sigmoid(gates[:, 3 * H:4 * H])
        c_new = f_g * c + i_g * g_g
        h_new = o_g * jnp.tanh(c_new)
        out_ref[local] = h_new.astype(out_ref.dtype)
        return h_new, c_new

    h_fin, c_fin = lax.fori_loop(0, Tc, step, (h_scr[d], c_scr[d]),
                                 unroll=True)
    h_scr[d] = h_fin
    c_scr[d] = c_fin


def bilstm_layer(xp, whh, *, max_time_chunk=16):
    """xp: [2, T, B, 4H] precomputed input projection; whh: [2, H, 4H].

    Returns direction-major hidden states [2, T, B, H] (dir 0 = fwd, 1 = bwd).
    """
    _, T, B, G4 = xp.shape
    H = whh.shape[1]

    # Largest divisor of T that is <= max_time_chunk (amortizes grid overhead).
    Tc = min(T, max_time_chunk)
    while T % Tc:
        Tc -= 1
    n_chunks = T // Tc

    def time_block(d, c):
        # forward: c ; backward: n_chunks - 1 - c
        return c + d * (n_chunks - 1 - 2 * c)

    return pl.pallas_call(
        _bilstm_layer_kernel,
        out_shape=jax.ShapeDtypeStruct((2, T, B, H), jnp.float32),
        grid_spec=pltpu.PrefetchScalarGridSpec(
            num_scalar_prefetch=0,
            grid=(2, n_chunks),
            in_specs=[
                # Precomputed projection: one [Tc, B, 4H] slab per grid step.
                pl.BlockSpec((None, Tc, B, G4),
                             lambda d, c: (d, time_block(d, c), 0, 0)),
                # Recurrent weights: fetched once per direction.  (At much
                # larger hidden sizes consider pipeline_mode=pl.Buffered(1)
                # to single-buffer this constant-index operand.)
                pl.BlockSpec((None, H, G4), lambda d, c: (d, 0, 0)),
            ],
            out_specs=pl.BlockSpec((None, Tc, B, H),
                                   lambda d, c: (d, time_block(d, c), 0, 0)),
            scratch_shapes=[pltpu.VMEM((2, B, H), jnp.float32),   # h per dir
                            pltpu.VMEM((2, B, H), jnp.float32)],  # c per dir
        ),
        compiler_params=pltpu.CompilerParams(
            dimension_semantics=("parallel", "arbitrary")),
    )(xp, whh)


# ----------------------------------------------------------------------------
# Kernel 2: fused self-attention + classification head, whole batch in one
# grid-free invocation (no per-batch-element grid steps).
#   hbar = tanh(H Ws1); S = Ws2^T hbar^T + pad_penalty; A = softmax_T(S)
#   M = A H ; logits = tanh(flatten(M) Wfc + bfc) Wpred + bpred
# ----------------------------------------------------------------------------
def _attn_cls_kernel(h_ref, pen_ref, ws1_ref, ws2t_ref, fcw_ref, fcb_ref,
                     pw_ref, pb_ref, logits_ref, attn_ref):
    hs = h_ref[...]                                   # [B, T, 2H]
    B = hs.shape[0]
    hs_c = _cast(hs)

    w1 = _cast(ws1_ref[...])                          # [2H, A]
    w1b = jnp.broadcast_to(w1, (B,) + w1.shape)       # [B, 2H, A]
    hbar = jnp.tanh(jnp.einsum("btd,bda->bta", hs_c, w1b,
                               preferred_element_type=jnp.float32))

    w2t = _cast(ws2t_ref[...])                        # [hops, A] (pre-transposed)
    w2b = jnp.broadcast_to(w2t, (B,) + w2t.shape)     # [B, hops, A]
    scores = jnp.einsum("bha,bta->bht", w2b, _cast(hbar),
                        preferred_element_type=jnp.float32)      # [B, hops, T]

    scores = scores + pen_ref[...]                    # pad penalty [B, 1, T]
    scores = scores - jnp.max(scores, axis=-1, keepdims=True)
    e = jnp.exp(scores)
    a = e / jnp.sum(e, axis=-1, keepdims=True)        # [B, hops, T]
    attn_ref[...] = a.astype(attn_ref.dtype)

    m = jnp.einsum("bht,btd->bhd", _cast(a), hs_c,
                   preferred_element_type=jnp.float32)           # [B, hops, 2H]

    fcb = fcb_ref[...]                                # [1, nfc]
    hops = fcw_ref.shape[0]
    pre = jnp.zeros((B, fcb.shape[-1]), jnp.float32)
    for hidx in range(hops):                          # hop-major flatten of M
        pre = pre + jnp.dot(_cast(m[:, hidx, :]), _cast(fcw_ref[hidx]),
                            preferred_element_type=jnp.float32)
    fc = jnp.tanh(pre + fcb)                          # [B, nfc]

    logits_ref[...] = (jnp.dot(_cast(fc), _cast(pw_ref[...]),
                               preferred_element_type=jnp.float32)
                       + pb_ref[...]).astype(logits_ref.dtype)


def attention_classifier(h_bt, penalty, ws1, ws2_t, fc_w3, fc_b, pred_w, pred_b):
    B, T, _ = h_bt.shape
    hops = ws2_t.shape[0]
    C = pred_w.shape[-1]
    return pl.pallas_call(
        _attn_cls_kernel,
        out_shape=(jax.ShapeDtypeStruct((B, C), jnp.float32),
                   jax.ShapeDtypeStruct((B, hops, T), jnp.float32)),
    )(h_bt, penalty, ws1, ws2_t, fc_w3, fc_b, pred_w, pred_b)


# ----------------------------------------------------------------------------
# Full model forward (layout glue in XLA, recurrence / attention in Pallas).
# ----------------------------------------------------------------------------
@jax.jit
def rnnsa_forward(input_ids, params):
    ids_t = input_ids.T                               # [T, B]
    x = params["embedding"][ids_t]                    # [T, B, E] (time-major gather)

    y = None
    for li, layer in enumerate(params["lstm"]):
        w_ih, w_hh, b = layer["w_ih"], layer["w_hh"], layer["b"]
        if li == 0:
            # [T,B,E] x [2,E,4H] -> [2,T,B,4H]
            xp = jnp.einsum("tbe,deg->dtbg", x, w_ih,
                            preferred_element_type=jnp.float32)
        else:
            # Consume the previous layer's direction-major output [2,T,B,H]
            # directly (no concatenate): reshape W_ih [2, 2H, 4H] -> [2,2,H,4H].
            H = y.shape[-1]
            w4 = w_ih.reshape(2, 2, H, w_ih.shape[-1])
            xp = jnp.einsum("etbh,dehg->dtbg", y, w4,
                            preferred_element_type=jnp.float32)
        xp = xp + b[:, None, None, :]                 # fused (b_ih + b_hh) bias
        y = bilstm_layer(xp, w_hh)                    # [2, T, B, H]

    T, B = ids_t.shape
    H = y.shape[-1]
    # Single rearrangement to batch-major concatenated features [B, T, 2H]
    # (feature order fwd|bwd, matching PyTorch bidirectional concat).
    h_bt = jnp.transpose(y, (2, 1, 0, 3)).reshape(B, T, 2 * H)

    penalty = (-10000.0 * (input_ids == PAD_ID).astype(jnp.float32))[:, None, :]

    hops = params["ws2"].shape[-1]
    nfc = params["fc_w"].shape[-1]
    fc_w3 = params["fc_w"].reshape(hops, 2 * H, nfc)  # hop-major flatten of M
    ws2_t = params["ws2"].T                           # [hops, attn_unit]

    logits, attn = attention_classifier(
        h_bt, penalty, params["ws1"], ws2_t, fc_w3, params["fc_b"],
        params["pred_w"], params["pred_b"])
    return logits, attn


# ----------------------------------------------------------------------------
# Deterministic synthetic parameters.
# ----------------------------------------------------------------------------
def make_params(key, *, vocab_size, class_num, emb_size, hidden_dim,
                n_layers, attn_unit, attn_hops, nfc):
    ks = iter(jax.random.split(key, 64))

    def u(shape, scale=0.1):
        return jax.random.uniform(next(ks), shape, jnp.float32, -scale, scale)

    params = {"embedding": u((vocab_size, emb_size))}

    layers = []
    in_size = emb_size
    scale = 1.0 / (hidden_dim ** 0.5)
    for _ in range(n_layers):
        layers.append({
            # fused gate layout [i | f | g | o] along the last (4H) axis
            "w_ih": u((2, in_size, 4 * hidden_dim), scale),
            "w_hh": u((2, hidden_dim, 4 * hidden_dim), scale),
            "b": u((2, 4 * hidden_dim), scale),   # = b_ih + b_hh of nn.LSTM
        })
        in_size = 2 * hidden_dim
    params["lstm"] = layers

    params["ws1"] = u((2 * hidden_dim, attn_unit))        # no bias
    params["ws2"] = u((attn_unit, attn_hops))             # no bias
    params["fc_w"] = u((2 * hidden_dim * attn_hops, nfc))
    params["fc_b"] = jnp.zeros((1, nfc), jnp.float32)
    params["pred_w"] = u((nfc, class_num))
    params["pred_b"] = jnp.zeros((1, class_num), jnp.float32)
    return params


if __name__ == "__main__":
    # Small, module-consistent shapes.
    B, T = 2, 8
    vocab_size, class_num = 50, 3
    emb_size = hidden_dim = attn_unit = nfc = 32
    n_layers, attn_hops = 2, 2

    key = jax.random.PRNGKey(0)
    k_ids, k_params = jax.random.split(key)

    input_ids = jax.random.randint(k_ids, (B, T), 1, vocab_size, dtype=jnp.int32)
    # pad the tail of the second sequence to exercise the attention mask
    input_ids = input_ids.at[1, 5:].set(PAD_ID)

    params = make_params(k_params,
                         vocab_size=vocab_size, class_num=class_num,
                         emb_size=emb_size, hidden_dim=hidden_dim,
                         n_layers=n_layers, attn_unit=attn_unit,
                         attn_hops=attn_hops, nfc=nfc)

    logits, attn = rnnsa_forward(input_ids, params)
    jax.block_until_ready((logits, attn))

    assert logits.shape == (B, class_num)
    assert attn.shape == (B, attn_hops, T)
    assert bool(jnp.all(jnp.isfinite(logits)))
    assert bool(jnp.all(jnp.abs(jnp.sum(attn, axis=-1) - 1.0) < 1e-4))
    print("KERNEL_OK")
</pallas_src>

<mosaic_0001>
module attributes {stable_mosaic.version = 11 : i64} {
  func.func @_bilstm_layer_kernel(%arg0: i32, %arg1: i32, %arg2: memref<1x8x2x128xf32, #tpu.memory_space<vmem>>, %arg3: memref<1x32x128xf32, #tpu.memory_space<vmem>>, %arg4: memref<1x8x2x32xf32, #tpu.memory_space<vmem>>, %arg5: memref<2x2x32xf32, #tpu.memory_space<vmem>>, %arg6: memref<2x2x32xf32, #tpu.memory_space<vmem>>) attributes {dimension_semantics = [#tpu.dimension_semantics<parallel>, #tpu.dimension_semantics<arbitrary>], iteration_bounds = array<i64: 2, 1>, scalar_prefetch = 0 : i64, scratch_operands = 2 : i64, tpu.core_type = #tpu.core_type<tc>, window_params = [{transform_indices = @transform_0, window_bounds = array<i64: 1, 8, 2, 128>}, {transform_indices = @transform_1, window_bounds = array<i64: 1, 32, 128>}, {transform_indices = @transform_2, window_bounds = array<i64: 1, 8, 2, 32>}]} {
    %c0_i32 = arith.constant 0 : i32
    %0 = arith.cmpi eq, %arg1, %c0_i32 : i32
    %1 = arith.extui %0 : i1 to i32
    %c0_i32_0 = arith.constant 0 : i32
    %2 = arith.cmpi ne, %1, %c0_i32_0 : i32
    scf.if %2 {
      %cst_107 = arith.constant 0.000000e+00 : f32
      %323 = vector.broadcast %cst_107 : f32 to vector<2x32xf32>
      %324 = arith.index_cast %arg0 : i32 to index
      %c0_108 = arith.constant 0 : index
      %c0_109 = arith.constant 0 : index
      %325 = vector.load %arg5[%324, %c0_108, %c0_109] : memref<2x2x32xf32, #tpu.memory_space<vmem>>, vector<1x2x32xf32>
      %326 = vector.shape_cast %325 : vector<1x2x32xf32> to vector<2x32xf32>
      %327 = vector.shape_cast %323 : vector<2x32xf32> to vector<1x2x32xf32>
      tpu.vector_store %arg5[%324, %c0_108, %c0_109], %327 {strides = array<i32>} : memref<2x2x32xf32, #tpu.memory_space<vmem>>, vector<1x2x32xf32>,
      %cst_110 = arith.constant 0.000000e+00 : f32
      %328 = vector.broadcast %cst_110 : f32 to vector<2x32xf32>
      %329 = arith.index_cast %arg0 : i32 to index
      %c0_111 = arith.constant 0 : index
      %c0_112 = arith.constant 0 : index
      %330 = vector.load %arg6[%329, %c0_111, %c0_112] : memref<2x2x32xf32, #tpu.memory_space<vmem>>, vector<1x2x32xf32>
      %331 = vector.shape_cast %330 : vector<1x2x32xf32> to vector<2x32xf32>
      %332 = vector.shape_cast %328 : vector<2x32xf32> to vector<1x2x32xf32>
      tpu.vector_store %arg6[%329, %c0_111, %c0_112], %332 {strides = array<i32>} : memref<2x2x32xf32, #tpu.memory_space<vmem>>, vector<1x2x32xf32>,
    } else {
    }
    %c0 = arith.constant 0 : index
    %c0_1 = arith.constant 0 : index
    %c0_2 = arith.constant 0 : index
    %3 = vector.load %arg3[%c0, %c0_1, %c0_2] : memref<1x32x128xf32, #tpu.memory_space<vmem>>, vector<1x32x128xf32>
    %4 = vector.shape_cast %3 : vector<1x32x128xf32> to vector<32x128xf32>
    %5 = arith.index_cast %arg0 : i32 to index
    %c0_3 = arith.constant 0 : index
    %c0_4 = arith.constant 0 : index
    %6 = vector.load %arg5[%5, %c0_3, %c0_4] : memref<2x2x32xf32, #tpu.memory_space<vmem>>, vector<1x2x32xf32>
    %7 = vector.shape_cast %6 : vector<1x2x32xf32> to vector<2x32xf32>
    %8 = arith.index_cast %arg0 : i32 to index
    %c0_5 = arith.constant 0 : index
    %c0_6 = arith.constant 0 : index
    %9 = vector.load %arg6[%8, %c0_5, %c0_6] : memref<2x2x32xf32, #tpu.memory_space<vmem>>, vector<1x2x32xf32>
    %10 = vector.shape_cast %9 : vector<1x2x32xf32> to vector<2x32xf32>
    %c0_i32_7 = arith.constant 0 : i32
    %c2_i32 = arith.constant 2 : i32
    %11 = arith.muli %c2_i32, %c0_i32_7 : i32
    %c7_i32 = arith.constant 7 : i32
    %12 = arith.subi %c7_i32, %11 : i32
    %13 = arith.muli %arg0, %12 : i32
    %14 = arith.addi %c0_i32_7, %13 : i32
    %c0_8 = arith.constant 0 : index
    %15 = arith.index_cast %14 : i32 to index
    %c0_9 = arith.constant 0 : index
    %c0_10 = arith.constant 0 : index
    %16 = vector.load %arg2[%c0_8, %15, %c0_9, %c0_10] : memref<1x8x2x128xf32, #tpu.memory_space<vmem>>, vector<1x1x2x128xf32>
    %17 = vector.shape_cast %16 : vector<1x1x2x128xf32> to vector<2x128xf32>
    %cst = arith.constant dense<0.000000e+00> : vector<2x128xf32>
    %18 = tpu.matmul %7, %4, %cst {dimension_numbers = #tpu.dot_dimension_numbers<[1], [0], [0], [1], [0, 0, 1, 1], [], []>} : vector<2x32xf32>, vector<32x128xf32>, vector<2x128xf32> -> vector<2x128xf32>
    %19 = arith.addf %17, %18 : vector<2x128xf32>
    %20 = vector.extract_strided_slice %19 {offsets = [0, 0], sizes = [2, 32], strides = [1, 1]} : vector<2x128xf32> to vector<2x32xf32>
    %21 = arith.negf %20 : vector<2x32xf32>
    %22 = math.exp %21 : vector<2x32xf32>
    %cst_11 = arith.constant 1.000000e+00 : f32
    %23 = vector.broadcast %cst_11 : f32 to vector<2x32xf32>
    %24 = arith.addf %23, %22 : vector<2x32xf32>
    %25 = arith.divf %23, %24 : vector<2x32xf32>
    %26 = vector.extract_strided_slice %19 {offsets = [0, 32], sizes = [2, 32], strides = [1, 1]} : vector<2x128xf32> to vector<2x32xf32>
    %27 = arith.negf %26 : vector<2x32xf32>
    %28 = math.exp %27 : vector<2x32xf32>
    %cst_12 = arith.constant 1.000000e+00 : f32
    %29 = vector.broadcast %cst_12 : f32 to vector<2x32xf32>
    %30 = arith.addf %29, %28 : vector<2x32xf32>
    %31 = arith.divf %29, %30 : vector<2x32xf32>
    %32 = vector.extract_strided_slice %19 {offsets = [0, 64], sizes = [2, 32], strides = [1, 1]} : vector<2x128xf32> to vector<2x32xf32>
    %33 = math.tanh %32 : vector<2x32xf32>
    %34 = vector.extract_strided_slice %19 {offsets = [0, 96], sizes = [2, 32], strides = [1, 1]} : vector<2x128xf32> to vector<2x32xf32>
    %35 = arith.negf %34 : vector<2x32xf32>
    %36 = math.exp %35 : vector<2x32xf32>
    %cst_13 = arith.constant 1.000000e+00 : f32
    %37 = vector.broadcast %cst_13 : f32 to vector<2x32xf32>
    %38 = arith.addf %37, %36 : vector<2x32xf32>
    %39 = arith.divf %37, %38 : vector<2x32xf32>
    %40 = arith.mulf %31, %10 : vector<2x32xf32>
    %41 = arith.mulf %25, %33 : vector<2x32xf32>
    %42 = arith.addf %40, %41 : vector<2x32xf32>
    %43 = math.tanh %42 : vector<2x32xf32>
    %44 = arith.mulf %39, %43 : vector<2x32xf32>
    %c0_14 = arith.constant 0 : index
    %45 = arith.index_cast %14 : i32 to index
    %c0_15 = arith.constant 0 : index
    %c0_16 = arith.constant 0 : index
    %46 = vector.load %arg4[%c0_14, %45, %c0_15, %c0_16] : memref<1x8x2x32xf32, #tpu.memory_space<vmem>>, vector<1x1x2x32xf32>
    %47 = vector.shape_cast %46 : vector<1x1x2x32xf32> to vector<2x32xf32>
    %48 = vector.shape_cast %44 : vector<2x32xf32> to vector<1x1x2x32xf32>
    tpu.vector_store %arg4[%c0_14, %45, %c0_15, %c0_16], %48 {strides = array<i32>} : memref<1x8x2x32xf32, #tpu.memory_space<vmem>>, vector<1x1x2x32xf32>,
    %c1_i32 = arith.constant 1 : i32
    %c2_i32_17 = arith.constant 2 : i32
    %49 = arith.muli %c2_i32_17, %c1_i32 : i32
    %c7_i32_18 = arith.constant 7 : i32
    %50 = arith.subi %c7_i32_18, %49 : i32
    %51 = arith.muli %arg0, %50 : i32
    %52 = arith.addi %c1_i32, %51 : i32
    %c0_19 = arith.constant 0 : index
    %53 = arith.index_cast %52 : i32 to index
    %c0_20 = arith.constant 0 : index
    %c0_21 = arith.constant 0 : index
    %54 = vector.load %arg2[%c0_19, %53, %c0_20, %c0_21] : memref<1x8x2x128xf32, #tpu.memory_space<vmem>>, vector<1x1x2x128xf32>
    %55 = vector.shape_cast %54 : vector<1x1x2x128xf32> to vector<2x128xf32>
    %cst_22 = arith.constant dense<0.000000e+00> : vector<2x128xf32>
    %56 = tpu.matmul %44, %4, %cst_22 {dimension_numbers = #tpu.dot_dimension_numbers<[1], [0], [0], [1], [0, 0, 1, 1], [], []>} : vector<2x32xf32>, vector<32x128xf32>, vector<2x128xf32> -> vector<2x128xf32>
    %57 = arith.addf %55, %56 : vector<2x128xf32>
    %58 = vector.extract_strided_slice %57 {offsets = [0, 0], sizes = [2, 32], strides = [1, 1]} : vector<2x128xf32> to vector<2x32xf32>
    %59 = arith.negf %58 : vector<2x32xf32>
    %60 = math.exp %59 : vector<2x32xf32>
    %cst_23 = arith.constant 1.000000e+00 : f32
    %61 = vector.broadcast %cst_23 : f32 to vector<2x32xf32>
    %62 = arith.addf %61, %60 : vector<2x32xf32>
    %63 = arith.divf %61, %62 : vector<2x32xf32>
    %64 = vector.extract_strided_slice %57 {offsets = [0, 32], sizes = [2, 32], strides = [1, 1]} : vector<2x128xf32> to vector<2x32xf32>
    %65 = arith.negf %64 : vector<2x32xf32>
    %66 = math.exp %65 : vector<2x32xf32>
    %cst_24 = arith.constant 1.000000e+00 : f32
    %67 = vector.broadcast %cst_24 : f32 to vector<2x32xf32>
    %68 = arith.addf %67, %66 : vector<2x32xf32>
    %69 = arith.divf %67, %68 : vector<2x32xf32>
    %70 = vector.extract_strided_slice %57 {offsets = [0, 64], sizes = [2, 32], strides = [1, 1]} : vector<2x128xf32> to vector<2x32xf32>
    %71 = math.tanh %70 : vector<2x32xf32>
    %72 = vector.extract_strided_slice %57 {offsets = [0, 96], sizes = [2, 32], strides = [1, 1]} : vector<2x128xf32> to vector<2x32xf32>
    %73 = arith.negf %72 : vector<2x32xf32>
    %74 = math.exp %73 : vector<2x32xf32>
    %cst_25 = arith.constant 1.000000e+00 : f32
    %75 = vector.broadcast %cst_25 : f32 to vector<2x32xf32>
    %76 = arith.addf %75, %74 : vector<2x32xf32>
    %77 = arith.divf %75, %76 : vector<2x32xf32>
    %78 = arith.mulf %69, %42 : vector<2x32xf32>
    %79 = arith.mulf %63, %71 : vector<2x32xf32>
    %80 = arith.addf %78, %79 : vector<2x32xf32>
    %81 = math.tanh %80 : vector<2x32xf32>
    %82 = arith.mulf %77, %81 : vector<2x32xf32>
    %c0_26 = arith.constant 0 : index
    %83 = arith.index_cast %52 : i32 to index
    %c0_27 = arith.constant 0 : index
    %c0_28 = arith.constant 0 : index
    %84 = vector.load %arg4[%c0_26, %83, %c0_27, %c0_28] : memref<1x8x2x32xf32, #tpu.memory_space<vmem>>, vector<1x1x2x32xf32>
    %85 = vector.shape_cast %84 : vector<1x1x2x32xf32> to vector<2x32xf32>
    %86 = vector.shape_cast %82 : vector<2x32xf32> to vector<1x1x2x32xf32>
    tpu.vector_store %arg4[%c0_26, %83, %c0_27, %c0_28], %86 {strides = array<i32>} : memref<1x8x2x32xf32, #tpu.memory_space<vmem>>, vector<1x1x2x32xf32>,
    %c2_i32_29 = arith.constant 2 : i32
    %c2_i32_30 = arith.constant 2 : i32
    %87 = arith.muli %c2_i32_30, %c2_i32_29 : i32
    %c7_i32_31 = arith.constant 7 : i32
    %88 = arith.subi %c7_i32_31, %87 : i32
    %89 = arith.muli %arg0, %88 : i32
    %90 = arith.addi %c2_i32_29, %89 : i32
    %c0_32 = arith.constant 0 : index
    %91 = arith.index_cast %90 : i32 to index
    %c0_33 = arith.constant 0 : index
    %c0_34 = arith.constant 0 : index
    %92 = vector.load %arg2[%c0_32, %91, %c0_33, %c0_34] : memref<1x8x2x128xf32, #tpu.memory_space<vmem>>, vector<1x1x2x128xf32>
    %93 = vector.shape_cast %92 : vector<1x1x2x128xf32> to vector<2x128xf32>
    %cst_35 = arith.constant dense<0.000000e+00> : vector<2x128xf32>
    %94 = tpu.matmul %82, %4, %cst_35 {dimension_numbers = #tpu.dot_dimension_numbers<[1], [0], [0], [1], [0, 0, 1, 1], [], []>} : vector<2x32xf32>, vector<32x128xf32>, vector<2x128xf32> -> vector<2x128xf32>
    %95 = arith.addf %93, %94 : vector<2x128xf32>
    %96 = vector.extract_strided_slice %95 {offsets = [0, 0], sizes = [2, 32], strides = [1, 1]} : vector<2x128xf32> to vector<2x32xf32>
    %97 = arith.negf %96 : vector<2x32xf32>
    %98 = math.exp %97 : vector<2x32xf32>
    %cst_36 = arith.constant 1.000000e+00 : f32
    %99 = vector.broadcast %cst_36 : f32 to vector<2x32xf32>
    %100 = arith.addf %99, %98 : vector<2x32xf32>
    %101 = arith.divf %99, %100 : vector<2x32xf32>
    %102 = vector.extract_strided_slice %95 {offsets = [0, 32], sizes = [2, 32], strides = [1, 1]} : vector<2x128xf32> to vector<2x32xf32>
    %103 = arith.negf %102 : vector<2x32xf32>
    %104 = math.exp %103 : vector<2x32xf32>
    %cst_37 = arith.constant 1.000000e+00 : f32
    %105 = vector.broadcast %cst_37 : f32 to vector<2x32xf32>
    %106 = arith.addf %105, %104 : vector<2x32xf32>
    %107 = arith.divf %105, %106 : vector<2x32xf32>
    %108 = vector.extract_strided_slice %95 {offsets = [0, 64], sizes = [2, 32], strides = [1, 1]} : vector<2x128xf32> to vector<2x32xf32>
    %109 = math.tanh %108 : vector<2x32xf32>
    %110 = vector.extract_strided_slice %95 {offsets = [0, 96], sizes = [2, 32], strides = [1, 1]} : vector<2x128xf32> to vector<2x32xf32>
    %111 = arith.negf %110 : vector<2x32xf32>
    %112 = math.exp %111 : vector<2x32xf32>
    %cst_38 = arith.constant 1.000000e+00 : f32
    %113 = vector.broadcast %cst_38 : f32 to vector<2x32xf32>
    %114 = arith.addf %113, %112 : vector<2x32xf32>
    %115 = arith.divf %113, %114 : vector<2x32xf32>
    %116 = arith.mulf %107, %80 : vector<2x32xf32>
    %117 = arith.mulf %101, %109 : vector<2x32xf32>
    %118 = arith.addf %116, %117 : vector<2x32xf32>
    %119 = math.tanh %118 : vector<2x32xf32>
    %120 = arith.mulf %115, %119 : vector<2x32xf32>
    %c0_39 = arith.constant 0 : index
    %121 = arith.index_cast %90 : i32 to index
    %c0_40 = arith.constant 0 : index
    %c0_41 = arith.constant 0 : index
    %122 = vector.load %arg4[%c0_39, %121, %c0_40, %c0_41] : memref<1x8x2x32xf32, #tpu.memory_space<vmem>>, vector<1x1x2x32xf32>
    %123 = vector.shape_cast %122 : vector<1x1x2x32xf32> to vector<2x32xf32>
    %124 = vector.shape_cast %120 : vector<2x32xf32> to vector<1x1x2x32xf32>
    tpu.vector_store %arg4[%c0_39, %121, %c0_40, %c0_41], %124 {strides = array<i32>} : memref<1x8x2x32xf32, #tpu.memory_space<vmem>>, vector<1x1x2x32xf32>,
    %c3_i32 = arith.constant 3 : i32
    %c2_i32_42 = arith.constant 2 : i32
    %125 = arith.muli %c2_i32_42, %c3_i32 : i32
    %c7_i32_43 = arith.constant 7 : i32
    %126 = arith.subi %c7_i32_43, %125 : i32
    %127 = arith.muli %arg0, %126 : i32
    %128 = arith.addi %c3_i32, %127 : i32
    %c0_44 = arith.constant 0 : index
    %129 = arith.index_cast %128 : i32 to index
    %c0_45 = arith.constant 0 : index
    %c0_46 = arith.constant 0 : index
    %130 = vector.load %arg2[%c0_44, %129, %c0_45, %c0_46] : memref<1x8x2x128xf32, #tpu.memory_space<vmem>>, vector<1x1x2x128xf32>
    %131 = vector.shape_cast %130 : vector<1x1x2x128xf32> to vector<2x128xf32>
    %cst_47 = arith.constant dense<0.000000e+00> : vector<2x128xf32>
    %132 = tpu.matmul %120, %4, %cst_47 {dimension_numbers = #tpu.dot_dimension_numbers<[1], [0], [0], [1], [0, 0, 1, 1], [], []>} : vector<2x32xf32>, vector<32x128xf32>, vector<2x128xf32> -> vector<2x128xf32>
    %133 = arith.addf %131, %132 : vector<2x128xf32>
    %134 = vector.extract_strided_slice %133 {offsets = [0, 0], sizes = [2, 32], strides = [1, 1]} : vector<2x128xf32> to vector<2x32xf32>
    %135 = arith.negf %134 : vector<2x32xf32>
    %136 = math.exp %135 : vector<2x32xf32>
    %cst_48 = arith.constant 1.000000e+00 : f32
    %137 = vector.broadcast %cst_48 : f32 to vector<2x32xf32>
    %138 = arith.addf %137, %136 : vector<2x32xf32>
    %139 = arith.divf %137, %138 : vector<2x32xf32>
    %140 = vector.extract_strided_slice %133 {offsets = [0, 32], sizes = [2, 32], strides = [1, 1]} : vector<2x128xf32> to vector<2x32xf32>
    %141 = arith.negf %140 : vector<2x32xf32>
    %142 = math.exp %141 : vector<2x32xf32>
    %cst_49 = arith.constant 1.000000e+00 : f32
    %143 = vector.broadcast %cst_49 : f32 to vector<2x32xf32>
    %144 = arith.addf %143, %142 : vector<2x32xf32>
    %145 = arith.divf %143, %144 : vector<2x32xf32>
    %146 = vector.extract_strided_slice %133 {offsets = [0, 64], sizes = [2, 32], strides = [1, 1]} : vector<2x128xf32> to vector<2x32xf32>
    %147 = math.tanh %146 : vector<2x32xf32>
    %148 = vector.extract_strided_slice %133 {offsets = [0, 96], sizes = [2, 32], strides = [1, 1]} : vector<2x128xf32> to vector<2x32xf32>
    %149 = arith.negf %148 : vector<2x32xf32>
    %150 = math.exp %149 : vector<2x32xf32>
    %cst_50 = arith.constant 1.000000e+00 : f32
    %151 = vector.broadcast %cst_50 : f32 to vector<2x32xf32>
    %152 = arith.addf %151, %150 : vector<2x32xf32>
    %153 = arith.divf %151, %152 : vector<2x32xf32>
    %154 = arith.mulf %145, %118 : vector<2x32xf32>
    %155 = arith.mulf %139, %147 : vector<2x32xf32>
    %156 = arith.addf %154, %155 : vector<2x32xf32>
    %157 = math.tanh %156 : vector<2x32xf32>
    %158 = arith.mulf %153, %157 : vector<2x32xf32>
    %c0_51 = arith.constant 0 : index
    %159 = arith.index_cast %128 : i32 to index
    %c0_52 = arith.constant 0 : index
    %c0_53 = arith.constant 0 : index
    %160 = vector.load %arg4[%c0_51, %159, %c0_52, %c0_53] : memref<1x8x2x32xf32, #tpu.memory_space<vmem>>, vector<1x1x2x32xf32>
    %161 = vector.shape_cast %160 : vector<1x1x2x32xf32> to vector<2x32xf32>
    %162 = vector.shape_cast %158 : vector<2x32xf32> to vector<1x1x2x32xf32>
    tpu.vector_store %arg4[%c0_51, %159, %c0_52, %c0_53], %162 {strides = array<i32>} : memref<1x8x2x32xf32, #tpu.memory_space<vmem>>, vector<1x1x2x32xf32>,
    %c4_i32 = arith.constant 4 : i32
    %c2_i32_54 = arith.constant 2 : i32
    %163 = arith.muli %c2_i32_54, %c4_i32 : i32
    %c7_i32_55 = arith.constant 7 : i32
    %164 = arith.subi %c7_i32_55, %163 : i32
    %165 = arith.muli %arg0, %164 : i32
    %166 = arith.addi %c4_i32, %165 : i32
    %c0_56 = arith.constant 0 : index
    %167 = arith.index_cast %166 : i32 to index
    %c0_57 = arith.constant 0 : index
    %c0_58 = arith.constant 0 : index
    %168 = vector.load %arg2[%c0_56, %167, %c0_57, %c0_58] : memref<1x8x2x128xf32, #tpu.memory_space<vmem>>, vector<1x1x2x128xf32>
    %169 = vector.shape_cast %168 : vector<1x1x2x128xf32> to vector<2x128xf32>
    %cst_59 = arith.constant dense<0.000000e+00> : vector<2x128xf32>
    %170 = tpu.matmul %158, %4, %cst_59 {dimension_numbers = #tpu.dot_dimension_numbers<[1], [0], [0], [1], [0, 0, 1, 1], [], []>} : vector<2x32xf32>, vector<32x128xf32>, vector<2x128xf32> -> vector<2x128xf32>
    %171 = arith.addf %169, %170 : vector<2x128xf32>
    %172 = vector.extract_strided_slice %171 {offsets = [0, 0], sizes = [2, 32], strides = [1, 1]} : vector<2x128xf32> to vector<2x32xf32>
    %173 = arith.negf %172 : vector<2x32xf32>
    %174 = math.exp %173 : vector<2x32xf32>
    %cst_60 = arith.constant 1.000000e+00 : f32
    %175 = vector.broadcast %cst_60 : f32 to vector<2x32xf32>
    %176 = arith.addf %175, %174 : vector<2x32xf32>
    %177 = arith.divf %175, %176 : vector<2x32xf32>
    %178 = vector.extract_strided_slice %171 {offsets = [0, 32], sizes = [2, 32], strides = [1, 1]} : vector<2x128xf32> to vector<2x32xf32>
    %179 = arith.negf %178 : vector<2x32xf32>
    %180 = math.exp %179 : vector<2x32xf32>
    %cst_61 = arith.constant 1.000000e+00 : f32
    %181 = vector.broadcast %cst_61 : f32 to vector<2x32xf32>
    %182 = arith.addf %181, %180 : vector<2x32xf32>
    %183 = arith.divf %181, %182 : vector<2x32xf32>
    %184 = vector.extract_strided_slice %171 {offsets = [0, 64], sizes = [2, 32], strides = [1, 1]} : vector<2x128xf32> to vector<2x32xf32>
    %185 = math.tanh %184 : vector<2x32xf32>
    %186 = vector.extract_strided_slice %171 {offsets = [0, 96], sizes = [2, 32], strides = [1, 1]} : vector<2x128xf32> to vector<2x32xf32>
    %187 = arith.negf %186 : vector<2x32xf32>
    %188 = math.exp %187 : vector<2x32xf32>
    %cst_62 = arith.constant 1.000000e+00 : f32
    %189 = vector.broadcast %cst_62 : f32 to vector<2x32xf32>
    %190 = arith.addf %189, %188 : vector<2x32xf32>
    %191 = arith.divf %189, %190 : vector<2x32xf32>
    %192 = arith.mulf %183, %156 : vector<2x32xf32>
    %193 = arith.mulf %177, %185 : vector<2x32xf32>
    %194 = arith.addf %192, %193 : vector<2x32xf32>
    %195 = math.tanh %194 : vector<2x32xf32>
    %196 = arith.mulf %191, %195 : vector<2x32xf32>
    %c0_63 = arith.constant 0 : index
    %197 = arith.index_cast %166 : i32 to index
    %c0_64 = arith.constant 0 : index
    %c0_65 = arith.constant 0 : index
    %198 = vector.load %arg4[%c0_63, %197, %c0_64, %c0_65] : memref<1x8x2x32xf32, #tpu.memory_space<vmem>>, vector<1x1x2x32xf32>
    %199 = vector.shape_cast %198 : vector<1x1x2x32xf32> to vector<2x32xf32>
    %200 = vector.shape_cast %196 : vector<2x32xf32> to vector<1x1x2x32xf32>
    tpu.vector_store %arg4[%c0_63, %197, %c0_64, %c0_65], %200 {strides = array<i32>} : memref<1x8x2x32xf32, #tpu.memory_space<vmem>>, vector<1x1x2x32xf32>,
    %c5_i32 = arith.constant 5 : i32
    %c2_i32_66 = arith.constant 2 : i32
    %201 = arith.muli %c2_i32_66, %c5_i32 : i32
    %c7_i32_67 = arith.constant 7 : i32
    %202 = arith.subi %c7_i32_67, %201 : i32
    %203 = arith.muli %arg0, %202 : i32
    %204 = arith.addi %c5_i32, %203 : i32
    %c0_68 = arith.constant 0 : index
    %205 = arith.index_cast %204 : i32 to index
    %c0_69 = arith.constant 0 : index
    %c0_70 = arith.constant 0 : index
    %206 = vector.load %arg2[%c0_68, %205, %c0_69, %c0_70] : memref<1x8x2x128xf32, #tpu.memory_space<vmem>>, vector<1x1x2x128xf32>
    %207 = vector.shape_cast %206 : vector<1x1x2x128xf32> to vector<2x128xf32>
    %cst_71 = arith.constant dense<0.000000e+00> : vector<2x128xf32>
    %208 = tpu.matmul %196, %4, %cst_71 {dimension_numbers = #tpu.dot_dimension_numbers<[1], [0], [0], [1], [0, 0, 1, 1], [], []>} : vector<2x32xf32>, vector<32x128xf32>, vector<2x128xf32> -> vector<2x128xf32>
    %209 = arith.addf %207, %208 : vector<2x128xf32>
    %210 = vector.extract_strided_slice %209 {offsets = [0, 0], sizes = [2, 32], strides = [1, 1]} : vector<2x128xf32> to vector<2x32xf32>
    %211 = arith.negf %210 : vector<2x32xf32>
    %212 = math.exp %211 : vector<2x32xf32>
    %cst_72 = arith.constant 1.000000e+00 : f32
    %213 = vector.broadcast %cst_72 : f32 to vector<2x32xf32>
    %214 = arith.addf %213, %212 : vector<2x32xf32>
    %215 = arith.divf %213, %214 : vector<2x32xf32>
    %216 = vector.extract_strided_slice %209 {offsets = [0, 32], sizes = [2, 32], strides = [1, 1]} : vector<2x128xf32> to vector<2x32xf32>
    %217 = arith.negf %216 : vector<2x32xf32>
    %218 = math.exp %217 : vector<2x32xf32>
    %cst_73 = arith.constant 1.000000e+00 : f32
    %219 = vector.broadcast %cst_73 : f32 to vector<2x32xf32>
    %220 = arith.addf %219, %218 : vector<2x32xf32>
    %221 = arith.divf %219, %220 : vector<2x32xf32>
    %222 = vector.extract_strided_slice %209 {offsets = [0, 64], sizes = [2, 32], strides = [1, 1]} : vector<2x128xf32> to vector<2x32xf32>
    %223 = math.tanh %222 : vector<2x32xf32>
    %224 = vector.extract_strided_slice %209 {offsets = [0, 96], sizes = [2, 32], strides = [1, 1]} : vector<2x128xf32> to vector<2x32xf32>
    %225 = arith.negf %224 : vector<2x32xf32>
    %226 = math.exp %225 : vector<2x32xf32>
    %cst_74 = arith.constant 1.000000e+00 : f32
    %227 = vector.broadcast %cst_74 : f32 to vector<2x32xf32>
    %228 = arith.addf %227, %226 : vector<2x32xf32>
    %229 = arith.divf %227, %228 : vector<2x32xf32>
    %230 = arith.mulf %221, %194 : vector<2x32xf32>
    %231 = arith.mulf %215, %223 : vector<2x32xf32>
    %232 = arith.addf %230, %231 : vector<2x32xf32>
    %233 = math.tanh %232 : vector<2x32xf32>
    %234 = arith.mulf %229, %233 : vector<2x32xf32>
    %c0_75 = arith.constant 0 : index
    %235 = arith.index_cast %204 : i32 to index
    %c0_76 = arith.constant 0 : index
    %c0_77 = arith.constant 0 : index
    %236 = vector.load %arg4[%c0_75, %235, %c0_76, %c0_77] : memref<1x8x2x32xf32, #tpu.memory_space<vmem>>, vector<1x1x2x32xf32>
    %237 = vector.shape_cast %236 : vector<1x1x2x32xf32> to vector<2x32xf32>
    %238 = vector.shape_cast %234 : vector<2x32xf32> to vector<1x1x2x32xf32>
    tpu.vector_store %arg4[%c0_75, %235, %c0_76, %c0_77], %238 {strides = array<i32>} : memref<1x8x2x32xf32, #tpu.memory_space<vmem>>, vector<1x1x2x32xf32>,
    %c6_i32 = arith.constant 6 : i32
    %c2_i32_78 = arith.constant 2 : i32
    %239 = arith.muli %c2_i32_78, %c6_i32 : i32
    %c7_i32_79 = arith.constant 7 : i32
    %240 = arith.subi %c7_i32_79, %239 : i32
    %241 = arith.muli %arg0, %240 : i32
    %242 = arith.addi %c6_i32, %241 : i32
    %c0_80 = arith.constant 0 : index
    %243 = arith.index_cast %242 : i32 to index
    %c0_81 = arith.constant 0 : index
    %c0_82 = arith.constant 0 : index
    %244 = vector.load %arg2[%c0_80, %243, %c0_81, %c0_82] : memref<1x8x2x128xf32, #tpu.memory_space<vmem>>, vector<1x1x2x128xf32>
    %245 = vector.shape_cast %244 : vector<1x1x2x128xf32> to vector<2x128xf32>
    %cst_83 = arith.constant dense<0.000000e+00> : vector<2x128xf32>
    %246 = tpu.matmul %234, %4, %cst_83 {dimension_numbers = #tpu.dot_dimension_numbers<[1], [0], [0], [1], [0, 0, 1, 1], [], []>} : vector<2x32xf32>, vector<32x128xf32>, vector<2x128xf32> -> vector<2x128xf32>
    %247 = arith.addf %245, %246 : vector<2x128xf32>
    %248 = vector.extract_strided_slice %247 {offsets = [0, 0], sizes = [2, 32], strides = [1, 1]} : vector<2x128xf32> to vector<2x32xf32>
    %249 = arith.negf %248 : vector<2x32xf32>
    %250 = math.exp %249 : vector<2x32xf32>
    %cst_84 = arith.constant 1.000000e+00 : f32
    %251 = vector.broadcast %cst_84 : f32 to vector<2x32xf32>
    %252 = arith.addf %251, %250 : vector<2x32xf32>
    %253 = arith.divf %251, %252 : vector<2x32xf32>
    %254 = vector.extract_strided_slice %247 {offsets = [0, 32], sizes = [2, 32], strides = [1, 1]} : vector<2x128xf32> to vector<2x32xf32>
    %255 = arith.negf %254 : vector<2x32xf32>
    %256 = math.exp %255 : vector<2x32xf32>
    %cst_85 = arith.constant 1.000000e+00 : f32
    %257 = vector.broadcast %cst_85 : f32 to vector<2x32xf32>
    %258 = arith.addf %257, %256 : vector<2x32xf32>
    %259 = arith.divf %257, %258 : vector<2x32xf32>
    %260 = vector.extract_strided_slice %247 {offsets = [0, 64], sizes = [2, 32], strides = [1, 1]} : vector<2x128xf32> to vector<2x32xf32>
    %261 = math.tanh %260 : vector<2x32xf32>
    %262 = vector.extract_strided_slice %247 {offsets = [0, 96], sizes = [2, 32], strides = [1, 1]} : vector<2x128xf32> to vector<2x32xf32>
    %263 = arith.negf %262 : vector<2x32xf32>
    %264 = math.exp %263 : vector<2x32xf32>
    %cst_86 = arith.constant 1.000000e+00 : f32
    %265 = vector.broadcast %cst_86 : f32 to vector<2x32xf32>
    %266 = arith.addf %265, %264 : vector<2x32xf32>
    %267 = arith.divf %265, %266 : vector<2x32xf32>
    %268 = arith.mulf %259, %232 : vector<2x32xf32>
    %269 = arith.mulf %253, %261 : vector<2x32xf32>
    %270 = arith.addf %268, %269 : vector<2x32xf32>
    %271 = math.tanh %270 : vector<2x32xf32>
    %272 = arith.mulf %267, %271 : vector<2x32xf32>
    %c0_87 = arith.constant 0 : index
    %273 = arith.index_cast %242 : i32 to index
    %c0_88 = arith.constant 0 : index
    %c0_89 = arith.constant 0 : index
    %274 = vector.load %arg4[%c0_87, %273, %c0_88, %c0_89] : memref<1x8x2x32xf32, #tpu.memory_space<vmem>>, vector<1x1x2x32xf32>
    %275 = vector.shape_cast %274 : vector<1x1x2x32xf32> to vector<2x32xf32>
    %276 = vector.shape_cast %272 : vector<2x32xf32> to vector<1x1x2x32xf32>
    tpu.vector_store %arg4[%c0_87, %273, %c0_88, %c0_89], %276 {strides = array<i32>} : memref<1x8x2x32xf32, #tpu.memory_space<vmem>>, vector<1x1x2x32xf32>,
    %c7_i32_90 = arith.constant 7 : i32
    %c2_i32_91 = arith.constant 2 : i32
    %277 = arith.muli %c2_i32_91, %c7_i32_90 : i32
    %c7_i32_92 = arith.constant 7 : i32
    %278 = arith.subi %c7_i32_92, %277 : i32
    %279 = arith.muli %arg0, %278 : i32
    %280 = arith.addi %c7_i32_90, %279 : i32
    %c0_93 = arith.constant 0 : index
    %281 = arith.index_cast %280 : i32 to index
    %c0_94 = arith.constant 0 : index
    %c0_95 = arith.constant 0 : index
    %282 = vector.load %arg2[%c0_93, %281, %c0_94, %c0_95] : memref<1x8x2x128xf32, #tpu.memory_space<vmem>>, vector<1x1x2x128xf32>
    %283 = vector.shape_cast %282 : vector<1x1x2x128xf32> to vector<2x128xf32>
    %cst_96 = arith.constant dense<0.000000e+00> : vector<2x128xf32>
    %284 = tpu.matmul %272, %4, %cst_96 {dimension_numbers = #tpu.dot_dimension_numbers<[1], [0], [0], [1], [0, 0, 1, 1], [], []>} : vector<2x32xf32>, vector<32x128xf32>, vector<2x128xf32> -> vector<2x128xf32>
    %285 = arith.addf %283, %284 : vector<2x128xf32>
    %286 = vector.extract_strided_slice %285 {offsets = [0, 0], sizes = [2, 32], strides = [1, 1]} : vector<2x128xf32> to vector<2x32xf32>
    %287 = arith.negf %286 : vector<2x32xf32>
    %288 = math.exp %287 : vector<2x32xf32>
    %cst_97 = arith.constant 1.000000e+00 : f32
    %289 = vector.broadcast %cst_97 : f32 to vector<2x32xf32>
    %290 = arith.addf %289, %288 : vector<2x32xf32>
    %291 = arith.divf %289, %290 : vector<2x32xf32>
    %292 = vector.extract_strided_slice %285 {offsets = [0, 32], sizes = [2, 32], strides = [1, 1]} : vector<2x128xf32> to vector<2x32xf32>
    %293 = arith.negf %292 : vector<2x32xf32>
    %294 = math.exp %293 : vector<2x32xf32>
    %cst_98 = arith.constant 1.000000e+00 : f32
    %295 = vector.broadcast %cst_98 : f32 to vector<2x32xf32>
    %296 = arith.addf %295, %294 : vector<2x32xf32>
    %297 = arith.divf %295, %296 : vector<2x32xf32>
    %298 = vector.extract_strided_slice %285 {offsets = [0, 64], sizes = [2, 32], strides = [1, 1]} : vector<2x128xf32> to vector<2x32xf32>
    %299 = math.tanh %298 : vector<2x32xf32>
    %300 = vector.extract_strided_slice %285 {offsets = [0, 96], sizes = [2, 32], strides = [1, 1]} : vector<2x128xf32> to vector<2x32xf32>
    %301 = arith.negf %300 : vector<2x32xf32>
    %302 = math.exp %301 : vector<2x32xf32>
    %cst_99 = arith.constant 1.000000e+00 : f32
    %303 = vector.broadcast %cst_99 : f32 to vector<2x32xf32>
    %304 = arith.addf %303, %302 : vector<2x32xf32>
    %305 = arith.divf %303, %304 : vector<2x32xf32>
    %306 = arith.mulf %297, %270 : vector<2x32xf32>
    %307 = arith.mulf %291, %299 : vector<2x32xf32>
    %308 = arith.addf %306, %307 : vector<2x32xf32>
    %309 = math.tanh %308 : vector<2x32xf32>
    %310 = arith.mulf %305, %309 : vector<2x32xf32>
    %c0_100 = arith.constant 0 : index
    %311 = arith.index_cast %280 : i32 to index
    %c0_101 = arith.constant 0 : index
    %c0_102 = arith.constant 0 : index
    %312 = vector.load %arg4[%c0_100, %311, %c0_101, %c0_102] : memref<1x8x2x32xf32, #tpu.memory_space<vmem>>, vector<1x1x2x32xf32>
    %313 = vector.shape_cast %312 : vector<1x1x2x32xf32> to vector<2x32xf32>
    %314 = vector.shape_cast %310 : vector<2x32xf32> to vector<1x1x2x32xf32>
    tpu.vector_store %arg4[%c0_100, %311, %c0_101, %c0_102], %314 {strides = array<i32>} : memref<1x8x2x32xf32, #tpu.memory_space<vmem>>, vector<1x1x2x32xf32>,
    %c8_i32 = arith.constant 8 : i32
    %315 = arith.index_cast %arg0 : i32 to index
    %c0_103 = arith.constant 0 : index
    %c0_104 = arith.constant 0 : index
    %316 = vector.load %arg5[%315, %c0_103, %c0_104] : memref<2x2x32xf32, #tpu.memory_space<vmem>>, vector<1x2x32xf32>
    %317 = vector.shape_cast %316 : vector<1x2x32xf32> to vector<2x32xf32>
    %318 = vector.shape_cast %310 : vector<2x32xf32> to vector<1x2x32xf32>
    tpu.vector_store %arg5[%315, %c0_103, %c0_104], %318 {strides = array<i32>} : memref<2x2x32xf32, #tpu.memory_space<vmem>>, vector<1x2x32xf32>,
    %319 = arith.index_cast %arg0 : i32 to index
    %c0_105 = arith.constant 0 : index
    %c0_106 = arith.constant 0 : index
    %320 = vector.load %arg6[%319, %c0_105, %c0_106] : memref<2x2x32xf32, #tpu.memory_space<vmem>>, vector<1x2x32xf32>
    %321 = vector.shape_cast %320 : vector<1x2x32xf32> to vector<2x32xf32>
    %322 = vector.shape_cast %308 : vector<2x32xf32> to vector<1x2x32xf32>
    tpu.vector_store %arg6[%319, %c0_105, %c0_106], %322 {strides = array<i32>} : memref<2x2x32xf32, #tpu.memory_space<vmem>>, vector<1x2x32xf32>,
    return
  }
  func.func @transform_0(%arg0: i32, %arg1: i32) -> (i32, i32, i32, i32) {
    %c2_i32 = arith.constant 2 : i32
    %0 = arith.muli %c2_i32, %arg1 : i32
    %c0_i32 = arith.constant 0 : i32
    %1 = arith.subi %c0_i32, %0 : i32
    %2 = arith.muli %arg0, %1 : i32
    %3 = arith.addi %arg1, %2 : i32
    %c0_i32_0 = arith.constant 0 : i32
    %c0_i32_1 = arith.constant 0 : i32
    %c0_i32_2 = arith.constant 0 : i32
    return %arg0, %3, %c0_i32_0, %c0_i32_1 : i32, i32, i32, i32
  }
  func.func @transform_1(%arg0: i32, %arg1: i32) -> (i32, i32, i32) {
    %c0_i32 = arith.constant 0 : i32
    %c0_i32_0 = arith.constant 0 : i32
    %c0_i32_1 = arith.constant 0 : i32
    return %arg0, %c0_i32, %c0_i32_0 : i32, i32, i32
  }
  func.func @transform_2(%arg0: i32, %arg1: i32) -> (i32, i32, i32, i32) {
    %c2_i32 = arith.constant 2 : i32
    %0 = arith.muli %c2_i32, %arg1 : i32
    %c0_i32 = arith.constant 0 : i32
    %1 = arith.subi %c0_i32, %0 : i32
    %2 = arith.muli %arg0, %1 : i32
    %3 = arith.addi %arg1, %2 : i32
    %c0_i32_0 = arith.constant 0 : i32
    %c0_i32_1 = arith.constant 0 : i32
    %c0_i32_2 = arith.constant 0 : i32
    return %arg0, %3, %c0_i32_0, %c0_i32_1 : i32, i32, i32, i32
  }
}

module attributes {stable_mosaic.version = 11 : i64} {
  func.func @_attn_cls_kernel(%arg0: memref<2x8x64xf32, #tpu.memory_space<vmem>>, %arg1: memref<2x1x8xf32, #tpu.memory_space<vmem>>, %arg2: memref<64x32xf32, #tpu.memory_space<vmem>>, %arg3: memref<2x32xf32, #tpu.memory_space<vmem>>, %arg4: memref<2x64x32xf32, #tpu.memory_space<vmem>>, %arg5: memref<1x32xf32, #tpu.memory_space<vmem>>, %arg6: memref<32x3xf32, #tpu.memory_space<vmem>>, %arg7: memref<1x3xf32, #tpu.memory_space<vmem>>, %arg8: memref<2x3xf32, #tpu.memory_space<vmem>>, %arg9: memref<2x2x8xf32, #tpu.memory_space<vmem>>) attributes {dimension_semantics = [], scalar_prefetch = 0 : i64, scratch_operands = 0 : i64, tpu.core_type = #tpu.core_type<tc>} {
    %c0 = arith.constant 0 : index
    %c0_0 = arith.constant 0 : index
    %c0_1 = arith.constant 0 : index
    %0 = vector.load %arg0[%c0, %c0_0, %c0_1] : memref<2x8x64xf32, #tpu.memory_space<vmem>>, vector<2x8x64xf32>
    %c0_2 = arith.constant 0 : index
    %c0_3 = arith.constant 0 : index
    %1 = vector.load %arg2[%c0_2, %c0_3] : memref<64x32xf32, #tpu.memory_space<vmem>>, vector<64x32xf32>
    %2 = vector.shape_cast %1 : vector<64x32xf32> to vector<1x64x32xf32>
    %3 = vector.broadcast %2 : vector<1x64x32xf32> to vector<2x64x32xf32>
    "tpu.trace_start"() <{level = 10 : i32, message = "btd,bda->bta"}> : () -> ()
    %cst = arith.constant dense<0.000000e+00> : vector<2x8x32xf32>
    %4 = tpu.matmul %0, %3, %cst {dimension_numbers = #tpu.dot_dimension_numbers<[2], [1], [1], [2], [0, 0, 0, 1, 1, 2], [0], [0]>} : vector<2x8x64xf32>, vector<2x64x32xf32>, vector<2x8x32xf32> -> vector<2x8x32xf32>
    "tpu.trace_stop"() : () -> ()
    %5 = math.tanh %4 : vector<2x8x32xf32>
    %c0_4 = arith.constant 0 : index
    %c0_5 = arith.constant 0 : index
    %6 = vector.load %arg3[%c0_4, %c0_5] : memref<2x32xf32, #tpu.memory_space<vmem>>, vector<2x32xf32>
    %7 = vector.shape_cast %6 : vector<2x32xf32> to vector<1x2x32xf32>
    %8 = vector.broadcast %7 : vector<1x2x32xf32> to vector<2x2x32xf32>
    "tpu.trace_start"() <{level = 10 : i32, message = "bha,bta->bht"}> : () -> ()
    %cst_6 = arith.constant dense<0.000000e+00> : vector<2x2x8xf32>
    %9 = tpu.matmul %8, %5, %cst_6 {dimension_numbers = #tpu.dot_dimension_numbers<[2], [2], [1], [1], [0, 0, 0, 1, 1, 1], [0], [0]>} : vector<2x2x32xf32>, vector<2x8x32xf32>, vector<2x2x8xf32> -> vector<2x2x8xf32>
    "tpu.trace_stop"() : () -> ()
    %c0_7 = arith.constant 0 : index
    %c0_8 = arith.constant 0 : index
    %c0_9 = arith.constant 0 : index
    %10 = vector.load %arg1[%c0_7, %c0_8, %c0_9] : memref<2x1x8xf32, #tpu.memory_space<vmem>>, vector<2x1x8xf32>
    %11 = vector.broadcast %10 : vector<2x1x8xf32> to vector<2x2x8xf32>
    %12 = arith.addf %9, %11 : vector<2x2x8xf32>
    %cst_10 = arith.constant dense<0xFF800000> : vector<2x2xf32>
    %13 = vector.multi_reduction <maximumf>, %12, %cst_10 [2] : vector<2x2x8xf32> to vector<2x2xf32>
    %14 = vector.shape_cast %13 : vector<2x2xf32> to vector<2x2x1xf32>
    %15 = vector.broadcast %14 : vector<2x2x1xf32> to vector<2x2x8xf32>
    %16 = arith.subf %12, %15 : vector<2x2x8xf32>
    %17 = math.exp %16 : vector<2x2x8xf32>
    %cst_11 = arith.constant dense<0.000000e+00> : vector<2x2xf32>
    %18 = vector.multi_reduction <add>, %17, %cst_11 [2] : vector<2x2x8xf32> to vector<2x2xf32>
    %19 = vector.shape_cast %18 : vector<2x2xf32> to vector<2x2x1xf32>
    %20 = vector.broadcast %19 : vector<2x2x1xf32> to vector<2x2x8xf32>
    %21 = arith.divf %17, %20 : vector<2x2x8xf32>
    %c0_12 = arith.constant 0 : index
    %c0_13 = arith.constant 0 : index
    %c0_14 = arith.constant 0 : index
    %22 = vector.load %arg9[%c0_12, %c0_13, %c0_14] : memref<2x2x8xf32, #tpu.memory_space<vmem>>, vector<2x2x8xf32>
    tpu.vector_store %arg9[%c0_12, %c0_13, %c0_14], %21 {strides = array<i32>} : memref<2x2x8xf32, #tpu.memory_space<vmem>>, vector<2x2x8xf32>,
    "tpu.trace_start"() <{level = 10 : i32, message = "bht,btd->bhd"}> : () -> ()
    %cst_15 = arith.constant dense<0.000000e+00> : vector<2x2x64xf32>
    %23 = tpu.matmul %21, %0, %cst_15 {dimension_numbers = #tpu.dot_dimension_numbers<[2], [1], [1], [2], [0, 0, 0, 1, 1, 2], [0], [0]>} : vector<2x2x8xf32>, vector<2x8x64xf32>, vector<2x2x64xf32> -> vector<2x2x64xf32>
    "tpu.trace_stop"() : () -> ()
    %c0_16 = arith.constant 0 : index
    %c0_17 = arith.constant 0 : index
    %24 = vector.load %arg5[%c0_16, %c0_17] : memref<1x32xf32, #tpu.memory_space<vmem>>, vector<1x32xf32>
    %cst_18 = arith.constant 0.000000e+00 : f32
    %25 = vector.broadcast %cst_18 : f32 to vector<2x32xf32>
    %26 = vector.extract_strided_slice %23 {offsets = [0, 0, 0], sizes = [2, 1, 64], strides = [1, 1, 1]} : vector<2x2x64xf32> to vector<2x1x64xf32>
    %27 = vector.shape_cast %26 : vector<2x1x64xf32> to vector<2x64xf32>
    %c0_19 = arith.constant 0 : index
    %c0_20 = arith.constant 0 : index
    %c0_21 = arith.constant 0 : index
    %28 = vector.load %arg4[%c0_19, %c0_20, %c0_21] : memref<2x64x32xf32, #tpu.memory_space<vmem>>, vector<1x64x32xf32>
    %29 = vector.shape_cast %28 : vector<1x64x32xf32> to vector<64x32xf32>
    %cst_22 = arith.constant dense<0.000000e+00> : vector<2x32xf32>
    %30 = tpu.matmul %27, %29, %cst_22 {dimension_numbers = #tpu.dot_dimension_numbers<[1], [0], [0], [1], [0, 0, 1, 1], [], []>} : vector<2x64xf32>, vector<64x32xf32>, vector<2x32xf32> -> vector<2x32xf32>
    %31 = arith.addf %25, %30 : vector<2x32xf32>
    %32 = vector.extract_strided_slice %23 {offsets = [0, 1, 0], sizes = [2, 1, 64], strides = [1, 1, 1]} : vector<2x2x64xf32> to vector<2x1x64xf32>
    %33 = vector.shape_cast %32 : vector<2x1x64xf32> to vector<2x64xf32>
    %c1 = arith.constant 1 : index
    %c0_23 = arith.constant 0 : index
    %c0_24 = arith.constant 0 : index
    %34 = vector.load %arg4[%c1, %c0_23, %c0_24] : memref<2x64x32xf32, #tpu.memory_space<vmem>>, vector<1x64x32xf32>
    %35 = vector.shape_cast %34 : vector<1x64x32xf32> to vector<64x32xf32>
    %cst_25 = arith.constant dense<0.000000e+00> : vector<2x32xf32>
    %36 = tpu.matmul %33, %35, %cst_25 {dimension_numbers = #tpu.dot_dimension_numbers<[1], [0], [0], [1], [0, 0, 1, 1], [], []>} : vector<2x64xf32>, vector<64x32xf32>, vector<2x32xf32> -> vector<2x32xf32>
    %37 = arith.addf %31, %36 : vector<2x32xf32>
    %38 = vector.broadcast %24 : vector<1x32xf32> to vector<2x32xf32>
    %39 = arith.addf %37, %38 : vector<2x32xf32>
    %40 = math.tanh %39 : vector<2x32xf32>
    %c0_26 = arith.constant 0 : index
    %c0_27 = arith.constant 0 : index
    %41 = vector.load %arg6[%c0_26, %c0_27] : memref<32x3xf32, #tpu.memory_space<vmem>>, vector<32x3xf32>
    %cst_28 = arith.constant dense<0.000000e+00> : vector<2x3xf32>
    %42 = tpu.matmul %40, %41, %cst_28 {dimension_numbers = #tpu.dot_dimension_numbers<[1], [0], [0], [1], [0, 0, 1, 1], [], []>} : vector<2x32xf32>, vector<32x3xf32>, vector<2x3xf32> -> vector<2x3xf32>
    %c0_29 = arith.constant 0 : index
    %c0_30 = arith.constant 0 : index
    %43 = vector.load %arg7[%c0_29, %c0_30] : memref<1x3xf32, #tpu.memory_space<vmem>>, vector<1x3xf32>
    %44 = vector.broadcast %43 : vector<1x3xf32> to vector<2x3xf32>
    %45 = arith.addf %42, %44 : vector<2x3xf32>
    %c0_31 = arith.constant 0 : index
    %c0_32 = arith.constant 0 : index
    %46 = vector.load %arg8[%c0_31, %c0_32] : memref<2x3xf32, #tpu.memory_space<vmem>>, vector<2x3xf32>
    tpu.vector_store %arg8[%c0_31, %c0_32], %45 {strides = array<i32>} : memref<2x3xf32, #tpu.memory_space<vmem>>, vector<2x3xf32>,
    return
  }
}

</mosaic_0001>

<llo_original>
// kernel: rnnsa_forward.5
$region0: #{rnnsa_forward.5}
  #allocation0 [shape = 'u32[]', space=smem, size = 0x4, offset = 0x4, fixed_abs, tag = 'smem constant byte address 0x4 - core index']
  #allocation1 [shape = 'u32[144,128]{1,0:T(1,128)}', space=vmem, size = 0x12000, scoped, tag = 'internal scratch']
  %s0 = inlined_call_operand.vmem [shape: f32[2,8,64], index: 0, kind: input, shape index: {}]
  %s1 = inlined_call_operand.vmem [shape: f32[2,1,8], index: 1, kind: input, shape index: {}]
  %s2 = inlined_call_operand.vmem [shape: f32[64,32], index: 2, kind: input, shape index: {}]
  %s3 = inlined_call_operand.vmem [shape: f32[2,32], index: 3, kind: input, shape index: {}]
  %s4 = inlined_call_operand.vmem [shape: f32[2,64,32], index: 4, kind: input, shape index: {}]
  %s5 = inlined_call_operand.vmem [shape: f32[1,32], index: 5, kind: input, shape index: {}]
  %s6 = inlined_call_operand.vmem [shape: f32[32,3], index: 6, kind: input, shape index: {}]
  %s7 = inlined_call_operand.vmem [shape: f32[1,3], index: 7, kind: input, shape index: {}]
  %s8 = inlined_call_operand.hbm [shape: f32[2,3], index: 8, kind: output, shape index: {0}]
  %s9 = inlined_call_operand.hbm [shape: f32[2,2,8], index: 9, kind: output, shape index: {1}]
  %10 = xla_tuple %s8, %s9
  %s11 = sld [smem:[#allocation0]]
  $region50: #{rnnsa_forward.5} parent=0
    _
  %s13 = ssub.s32 1, %s11
  %s14 = scalar_select 0, %s13, %s11
  $region1: #{rnnsa_forward.5} parent=0
    #allocation2 [shape = 'u8[1024]{0}', space=vmem, size = 0x400, scoped, tag = 'output window, operand 0, single buffered']
    #allocation3 [shape = 's32[1]{0}', space=sflag, size = 0x4, scoped, tag = 'scoped memory for rnnsa_forward.5']
    #allocation4 [shape = 'u8[2048]{0}', space=vmem, size = 0x800, scoped, tag = 'output window, operand 1, single buffered']
    #allocation5 [shape = 's32[1]{0}', space=sflag, size = 0x4, scoped, tag = 'scoped memory for rnnsa_forward.5']
    %15 = vsyncpa [#allocation3], 0
    %16 = vsyncpa [#allocation5], 0
    // Predicated region
    $region2: #{rnnsa_forward.5} parent=1 // pred_check
      _
    $region3: #{rnnsa_forward.5} parent=1 // pred_check_branch
      %18 = sbr.rel (0) target = $region5
    $region4: #{rnnsa_forward.5} parent=1 // pred_region
      _
    $region5: #{rnnsa_forward.5} parent=1 // pred_fallthru
      _
    // Predicated region
    $region6: #{rnnsa_forward.5} parent=1 // pred_check
      _
    $region7: #{rnnsa_forward.5} parent=1 // pred_check_branch
      %20 = sbr.rel (0) target = $region9
    $region8: #{rnnsa_forward.5} parent=1 // pred_region
      _
    $region9: #{rnnsa_forward.5} parent=1 // pred_fallthru
      _
    // Predicated region
    $region10: #{rnnsa_forward.5} parent=1 // pred_check
      _
    $region11: #{rnnsa_forward.5} parent=1 // pred_check_branch
      %22 = sbr.rel (0) target = $region13
    $region12: #{rnnsa_forward.5} parent=1 // pred_region
      _
    $region13: #{rnnsa_forward.5} parent=1 // pred_fallthru
      _
    // Predicated region
    $region14: #{rnnsa_forward.5} parent=1 // pred_check
      _
    $region15: #{rnnsa_forward.5} parent=1 // pred_check_branch
      %24 = sbr.rel (0) target = $region17
    $region16: #{rnnsa_forward.5} parent=1 // pred_region
      _
    $region17: #{rnnsa_forward.5} parent=1 // pred_fallthru
      _
    // Predicated region
    $region18: #{rnnsa_forward.5} parent=1 // pred_check
      _
    $region19: #{rnnsa_forward.5} parent=1 // pred_check_branch
      %26 = sbr.rel (0) target = $region21
    $region20: #{rnnsa_forward.5} parent=1 // pred_region
      _
    $region21: #{rnnsa_forward.5} parent=1 // pred_fallthru
      _
    // Predicated region
    $region22: #{rnnsa_forward.5} parent=1 // pred_check
      _
    $region23: #{rnnsa_forward.5} parent=1 // pred_check_branch
      %28 = sbr.rel (0) target = $region25
    $region24: #{rnnsa_forward.5} parent=1 // pred_region
      _
    $region25: #{rnnsa_forward.5} parent=1 // pred_fallthru
      _
    // Predicated region
    $region26: #{rnnsa_forward.5} parent=1 // pred_check
      _
    $region27: #{rnnsa_forward.5} parent=1 // pred_check_branch
      %30 = sbr.rel (0) target = $region29
    $region28: #{rnnsa_forward.5} parent=1 // pred_region
      _
    $region29: #{rnnsa_forward.5} parent=1 // pred_fallthru
      _
    // Predicated region
    $region30: #{rnnsa_forward.5} parent=1 // pred_check
      _
    $region31: #{rnnsa_forward.5} parent=1 // pred_check_branch
      %32 = sbr.rel (0) target = $region33
    $region32: #{rnnsa_forward.5} parent=1 // pred_region
      _
    $region33: #{rnnsa_forward.5} parent=1 // pred_fallthru
      _
    %v33 = vld [vmem:[%s0] sm:$0xff]
    %v34 = vld [vmem:[%s0 + $0x8] sm:$0xff]
    %v35 = vld [vmem:[%s2] sm:$0xff]
    %v36 = vld [vmem:[%s2 + $0x8] sm:$0xff]
    %v37 = vld [vmem:[%s2 + $0x10] sm:$0xff]
    %v38 = vld [vmem:[%s2 + $0x18] sm:$0xff]
    %v39 = vld [vmem:[%s2 + $0x20] sm:$0xff]
    %v40 = vld [vmem:[%s2 + $0x28] sm:$0xff]
    %v41 = vld [vmem:[%s2 + $0x30] sm:$0xff]
    %v42 = vld [vmem:[%s2 + $0x38] sm:$0xff]
    %vm43 = vcmask 523264
    %v45 = vsel %vm43, %v33, 0
    %47 = vmatprep.subr.mxu0 0.0
    %48 = vmatpush1.msra.mxu0 %v35
    %49 = vmatprep.subr.mxu0 0.0
    %50 = vmatpush1.msra.mxu0 %v36
    %51 = vmatprep.subr.mxu0 0.0
    %52 = vmatpush1.msra.mxu0 %v37
    %53 = vmatprep.subr.mxu0 0.0
    %54 = vmatpush1.msra.mxu0 %v38
    %55 = vmatprep.subr.mxu0 0.0
    %56 = vmatpush1.msra.mxu0 %v39
    %57 = vmatprep.subr.mxu0 0.0
    %58 = vmatpush1.msra.mxu0 %v40
    %59 = vmatprep.subr.mxu0 0.0
    %60 = vmatpush1.msra.mxu0 %v41
    %61 = vmatprep.subr.mxu0 0.0
    %62 = vmatpush1.msra.mxu0 %v42
    %63 = vmatprep.subr.mxu0 0.0
    %64 = vmatpush1.msra.mxu0 0.0
    %65 = vmatprep.subr.mxu0 0.0
    %66 = vmatpush1.msra.mxu0 0.0
    %67 = vmatprep.subr.mxu0 0.0
    %68 = vmatpush1.msra.mxu0 0.0
    %69 = vmatprep.subr.mxu0 0.0
    %70 = vmatpush1.msra.mxu0 0.0
    %71 = vmatprep.subr.mxu0 0.0
    %72 = vmatpush1.msra.mxu0 0.0
    %73 = vmatprep.subr.mxu0 0.0
    %74 = vmatpush1.msra.mxu0 0.0
    %75 = vmatprep.subr.mxu0 0.0
    %76 = vmatpush1.msra.mxu0 0.0
    %77 = vmatprep.subr.mxu0 0.0
    %78 = vmatpush1.msra.mxu0 0.0
    %79 = vmatprep.subr.mxu0 0.0
    %80 = vmatpush1.msra.mxu0 0.0
    %81 = vmatprep.subr.mxu0 0.0
    %82 = vmatpush1.msra.mxu0 0.0
    %83 = vmatprep.subr.mxu0 0.0
    %84 = vmatpush1.msra.mxu0 0.0
    %85 = vmatprep.subr.mxu0 0.0
    %86 = vmatpush1.msra.mxu0 0.0
    %87 = vmatprep.subr.mxu0 0.0
    %88 = vmatpush1.msra.mxu0 0.0
    %89 = vmatprep.subr.mxu0 0.0
    %90 = vmatpush1.msra.mxu0 0.0
    %91 = vmatprep.subr.mxu0 0.0
    %92 = vmatpush1.msra.mxu0 0.0
    %93 = vmatprep.subr.mxu0 0.0
    %94 = vmatpush1.msra.mxu0 0.0
    %95 = vmatprep.subr.mxu0 0.0
    %96 = vmatpush1.msra.mxu0 0.0
    %97 = vmatprep.subr.mxu0 0.0
    %98 = vmatpush1.msra.mxu0 0.0
    %99 = vmatprep.subr.mxu0 0.0
    %100 = vmatpush1.msra.mxu0 0.0
    %101 = vmatprep.subr.mxu0 0.0
    %102 = vmatpush1.msra.mxu0 0.0
    %103 = vmatprep.subr.mxu0 0.0
    %104 = vmatpush1.msra.mxu0 0.0
    %105 = vmatprep.subr.mxu0 0.0
    %106 = vmatpush1.msra.mxu0 0.0
    %107 = vmatprep.subr.mxu0 0.0
    %108 = vmatpush1.msra.mxu0 0.0
    %109 = vmatprep.subr.mxu0 0.0
    %110 = vmatpush1.msra.mxu0 0.0
    %111 = vmatprep.mubr.f32.mxu0 0.0
    %112 = vmatmul.mubr.f32.gmra.mrb[0].mxu0 %v45
    %v113 = vpop.f32.mrb[0].mxu0
    %v114 = vadd.f32 0.0, %v113
    %v115 = vpop.f32.mrb[0].mxu0
    %116 = vdwg.mxu0
    %v118 = vsel %vm43, %v34, 0
    %120 = vmatprep.subr.mxu0 0.0
    %121 = vmatpush1.msra.mxu0 %v35
    %122 = vmatprep.subr.mxu0 0.0
    %123 = vmatpush1.msra.mxu0 %v36
    %124 = vmatprep.subr.mxu0 0.0
    %125 = vmatpush1.msra.mxu0 %v37
    %126 = vmatprep.subr.mxu0 0.0
    %127 = vmatpush1.msra.mxu0 %v38
    %128 = vmatprep.subr.mxu0 0.0
    %129 = vmatpush1.msra.mxu0 %v39
    %130 = vmatprep.subr.mxu0 0.0
    %131 = vmatpush1.msra.mxu0 %v40
    %132 = vmatprep.subr.mxu0 0.0
    %133 = vmatpush1.msra.mxu0 %v41
    %134 = vmatprep.subr.mxu0 0.0
    %135 = vmatpush1.msra.mxu0 %v42
    %136 = vmatprep.subr.mxu0 0.0
    %137 = vmatpush1.msra.mxu0 0.0
    %138 = vmatprep.subr.mxu0 0.0
    %139 = vmatpush1.msra.mxu0 0.0
    %140 = vmatprep.subr.mxu0 0.0
    %141 = vmatpush1.msra.mxu0 0.0
    %142 = vmatprep.subr.mxu0 0.0
    %143 = vmatpush1.msra.mxu0 0.0
    %144 = vmatprep.subr.mxu0 0.0
    %145 = vmatpush1.msra.mxu0 0.0
    %146 = vmatprep.subr.mxu0 0.0
    %147 = vmatpush1.msra.mxu0 0.0
    %148 = vmatprep.subr.mxu0 0.0
    %149 = vmatpush1.msra.mxu0 0.0
    %150 = vmatprep.subr.mxu0 0.0
    %151 = vmatpush1.msra.mxu0 0.0
    %152 = vmatprep.subr.mxu0 0.0
    %153 = vmatpush1.msra.mxu0 0.0
    %154 = vmatprep.subr.mxu0 0.0
    %155 = vmatpush1.msra.mxu0 0.0
    %156 = vmatprep.subr.mxu0 0.0
    %157 = vmatpush1.msra.mxu0 0.0
    %158 = vmatprep.subr.mxu0 0.0
    %159 = vmatpush1.msra.mxu0 0.0
    %160 = vmatprep.subr.mxu0 0.0
    %161 = vmatpush1.msra.mxu0 0.0
    %162 = vmatprep.subr.mxu0 0.0
    %163 = vmatpush1.msra.mxu0 0.0
    %164 = vmatprep.subr.mxu0 0.0
    %165 = vmatpush1.msra.mxu0 0.0
    %166 = vmatprep.subr.mxu0 0.0
    %167 = vmatpush1.msra.mxu0 0.0
    %168 = vmatprep.subr.mxu0 0.0
    %169 = vmatpush1.msra.mxu0 0.0
    %170 = vmatprep.subr.mxu0 0.0
    %171 = vmatpush1.msra.mxu0 0.0
    %172 = vmatprep.subr.mxu0 0.0
    %173 = vmatpush1.msra.mxu0 0.0
    %174 = vmatprep.subr.mxu0 0.0
    %175 = vmatpush1.msra.mxu0 0.0
    %176 = vmatprep.subr.mxu0 0.0
    %177 = vmatpush1.msra.mxu0 0.0
    %178 = vmatprep.subr.mxu0 0.0
    %179 = vmatpush1.msra.mxu0 0.0
    %180 = vmatprep.subr.mxu0 0.0
    %181 = vmatpush1.msra.mxu0 0.0
    %182 = vmatprep.subr.mxu0 0.0
    %183 = vmatpush1.msra.mxu0 0.0
    %184 = vmatprep.mubr.f32.mxu0 0.0
    %185 = vmatmul.mubr.f32.gmra.mrb[0].mxu0 %v118
    %v186 = vpop.f32.mrb[0].mxu0
    %v187 = vadd.f32 0.0, %v186
    %v188 = vpop.f32.mrb[0].mxu0
    %189 = vdwg.mxu0
    %v190 = vtanh.pop %v114
    %v191 = vtanh.pop %v187
    %v192 = vld [vmem:[%s3] sm:$0x3]
    %v193 = vld [vmem:[%s1] sm:$0x1]
    %v194 = vld [vmem:[%s1 + $0x1] sm:$0x1]
    %v197 = vlaneseq
    %v198 = vshrl.u32 %v197, 7
    %v199 = vsub.s32 0, %v198
    %v200 = vrot.slane %v193, %v199
    %v201 = vlaneseq
    %v202 = vshrl.u32 %v201, 7
    %v203 = vsub.s32 0, %v202
    %v204 = vrot.slane %v194, %v203
    %vm207 = vcmask 261120
    %v209 = vsel %vm207, %v192, 0
    %v212 = vsel %vm207, %v190, 0
    %214 = vmatprep.subr.mxu0 0.0
    %215 = vmatpush1.xpose.msra.mxu0 %v212
    %216 = vmatprep.subr.mxu0 0.0
    %217 = vmatpush1.xpose.msra.mxu0 0.0
    %218 = vmatprep.subr.mxu0 0.0
    %219 = vmatpush1.xpose.msra.mxu0 0.0
    %220 = vmatprep.subr.mxu0 0.0
    %221 = vmatpush1.xpose.msra.mxu0 0.0
    %222 = vmatprep.subr.mxu0 0.0
    %223 = vmatpush1.xpose.msra.mxu0 0.0
    %224 = vmatprep.subr.mxu0 0.0
    %225 = vmatpush1.xpose.msra.mxu0 0.0
    %226 = vmatprep.subr.mxu0 0.0
    %227 = vmatpush1.xpose.msra.mxu0 0.0
    %228 = vmatprep.subr.mxu0 0.0
    %229 = vmatpush1.xpose.msra.mxu0 0.0
    %230 = vmatprep.subr.mxu0 0.0
    %231 = vmatpush1.xpose.msra.mxu0 0.0
    %232 = vmatprep.subr.mxu0 0.0
    %233 = vmatpush1.xpose.msra.mxu0 0.0
    %234 = vmatprep.subr.mxu0 0.0
    %235 = vmatpush1.xpose.msra.mxu0 0.0
    %236 = vmatprep.subr.mxu0 0.0
    %237 = vmatpush1.xpose.msra.mxu0 0.0
    %238 = vmatprep.subr.mxu0 0.0
    %239 = vmatpush1.xpose.msra.mxu0 0.0
    %240 = vmatprep.subr.mxu0 0.0
    %241 = vmatpush1.xpose.msra.mxu0 0.0
    %242 = vmatprep.subr.mxu0 0.0
    %243 = vmatpush1.xpose.msra.mxu0 0.0
    %244 = vmatprep.subr.mxu0 0.0
    %245 = vmatpush1.xpose.msra.mxu0 0.0
    %246 = vmatprep.subr.mxu0 0.0
    %247 = vmatpush1.xpose.msra.mxu0 0.0
    %248 = vmatprep.subr.mxu0 0.0
    %249 = vmatpush1.xpose.msra.mxu0 0.0
    %250 = vmatprep.subr.mxu0 0.0
    %251 = vmatpush1.xpose.msra.mxu0 0.0
    %252 = vmatprep.subr.mxu0 0.0
    %253 = vmatpush1.xpose.msra.mxu0 0.0
    %254 = vmatprep.subr.mxu0 0.0
    %255 = vmatpush1.xpose.msra.mxu0 0.0
    %256 = vmatprep.subr.mxu0 0.0
    %257 = vmatpush1.xpose.msra.mxu0 0.0
    %258 = vmatprep.subr.mxu0 0.0
    %259 = vmatpush1.xpose.msra.mxu0 0.0
    %260 = vmatprep.subr.mxu0 0.0
    %261 = vmatpush1.xpose.msra.mxu0 0.0
    %262 = vmatprep.subr.mxu0 0.0
    %263 = vmatpush1.xpose.msra.mxu0 0.0
    %264 = vmatprep.subr.mxu0 0.0
    %265 = vmatpush1.xpose.msra.mxu0 0.0
    %266 = vmatprep.subr.mxu0 0.0
    %267 = vmatpush1.xpose.msra.mxu0 0.0
    %268 = vmatprep.subr.mxu0 0.0
    %269 = vmatpush1.xpose.msra.mxu0 0.0
    %270 = vmatprep.subr.mxu0 0.0
    %271 = vmatpush1.xpose.msra.mxu0 0.0
    %272 = vmatprep.subr.mxu0 0.0
    %273 = vmatpush1.xpose.msra.mxu0 0.0
    %274 = vmatprep.subr.mxu0 0.0
    %275 = vmatpush1.xpose.msra.mxu0 0.0
    %276 = vmatprep.subr.mxu0 0.0
    %277 = vmatpush1.xpose.msra.mxu0 0.0
    %278 = vmatprep.mubr.f32.mxu0 0.0
    %279 = vmatmul.mubr.f32.gmra.mrb[0].mxu0 %v209
    %v280 = vpop.f32.mrb[0].mxu0
    %v281 = vadd.f32 %v200, %v280
    %v282 = vpop.f32.mrb[0].mxu0
    %283 = vdwg.mxu0
    %v285 = vsel %vm207, %v191, 0
    %287 = vmatprep.subr.mxu0 0.0
    %288 = vmatpush1.xpose.msra.mxu0 %v285
    %289 = vmatprep.subr.mxu0 0.0
    %290 = vmatpush1.xpose.msra.mxu0 0.0
    %291 = vmatprep.subr.mxu0 0.0
    %292 = vmatpush1.xpose.msra.mxu0 0.0
    %293 = vmatprep.subr.mxu0 0.0
    %294 = vmatpush1.xpose.msra.mxu0 0.0
    %295 = vmatprep.subr.mxu0 0.0
    %296 = vmatpush1.xpose.msra.mxu0 0.0
    %297 = vmatprep.subr.mxu0 0.0
    %298 = vmatpush1.xpose.msra.mxu0 0.0
    %299 = vmatprep.subr.mxu0 0.0
    %300 = vmatpush1.xpose.msra.mxu0 0.0
    %301 = vmatprep.subr.mxu0 0.0
    %302 = vmatpush1.xpose.msra.mxu0 0.0
    %303 = vmatprep.subr.mxu0 0.0
    %304 = vmatpush1.xpose.msra.mxu0 0.0
    %305 = vmatprep.subr.mxu0 0.0
    %306 = vmatpush1.xpose.msra.mxu0 0.0
    %307 = vmatprep.subr.mxu0 0.0
    %308 = vmatpush1.xpose.msra.mxu0 0.0
    %309 = vmatprep.subr.mxu0 0.0
    %310 = vmatpush1.xpose.msra.mxu0 0.0
    %311 = vmatprep.subr.mxu0 0.0
    %312 = vmatpush1.xpose.msra.mxu0 0.0
    %313 = vmatprep.subr.mxu0 0.0
    %314 = vmatpush1.xpose.msra.mxu0 0.0
    %315 = vmatprep.subr.mxu0 0.0
    %316 = vmatpush1.xpose.msra.mxu0 0.0
    %317 = vmatprep.subr.mxu0 0.0
    %318 = vmatpush1.xpose.msra.mxu0 0.0
    %319 = vmatprep.subr.mxu0 0.0
    %320 = vmatpush1.xpose.msra.mxu0 0.0
    %321 = vmatprep.subr.mxu0 0.0
    %322 = vmatpush1.xpose.msra.mxu0 0.0
    %323 = vmatprep.subr.mxu0 0.0
    %324 = vmatpush1.xpose.msra.mxu0 0.0
    %325 = vmatprep.subr.mxu0 0.0
    %326 = vmatpush1.xpose.msra.mxu0 0.0
    %327 = vmatprep.subr.mxu0 0.0
    %328 = vmatpush1.xpose.msra.mxu0 0.0
    %329 = vmatprep.subr.mxu0 0.0
    %330 = vmatpush1.xpose.msra.mxu0 0.0
    %331 = vmatprep.subr.mxu0 0.0
    %332 = vmatpush1.xpose.msra.mxu0 0.0
    %333 = vmatprep.subr.mxu0 0.0
    %334 = vmatpush1.xpose.msra.mxu0 0.0
    %335 = vmatprep.subr.mxu0 0.0
    %336 = vmatpush1.xpose.msra.mxu0 0.0
    %337 = vmatprep.subr.mxu0 0.0
    %338 = vmatpush1.xpose.msra.mxu0 0.0
    %339 = vmatprep.subr.mxu0 0.0
    %340 = vmatpush1.xpose.msra.mxu0 0.0
    %341 = vmatprep.subr.mxu0 0.0
    %342 = vmatpush1.xpose.msra.mxu0 0.0
    %343 = vmatprep.subr.mxu0 0.0
    %344 = vmatpush1.xpose.msra.mxu0 0.0
    %345 = vmatprep.subr.mxu0 0.0
    %346 = vmatpush1.xpose.msra.mxu0 0.0
    %347 = vmatprep.subr.mxu0 0.0
    %348 = vmatpush1.xpose.msra.mxu0 0.0
    %349 = vmatprep.subr.mxu0 0.0
    %350 = vmatpush1.xpose.msra.mxu0 0.0
    %351 = vmatprep.mubr.f32.mxu0 0.0
    %352 = vmatmul.mubr.f32.gmra.mrb[0].mxu0 %v209
    %v353 = vpop.f32.mrb[0].mxu0
    %v354 = vadd.f32 %v204, %v353
    %v355 = vpop.f32.mrb[0].mxu0
    %356 = vdwg.mxu0
    %vm357 = vcmask 58368
    %v358 = vsel %vm357, %v281, -inf
    %359 = vmax.xlane.f32.xlu0 %v358
    %v360 = vpop.xlane.xlu0 %359
    %v361 = vsel %vm357, %v354, -inf
    %362 = vmax.xlane.f32.xlu0 %v361
    %v363 = vpop.xlane.xlu0 %362
    %v364 = vsub.f32 %v281, %v360
    %v365 = vsub.f32 %v354, %v363
    %v366 = vmul.f32 %v364, 1.442695
    %v367 = vpow.pop %v366
    %v368 = vmul.f32 %v365, 1.442695
    %v369 = vpow.pop %v368
    %v370 = vsel %vm357, %v367, 0.0
    %371 = vadd.xlane.f32.xlu0 %v370
    %v372 = vpop.xlane.xlu0 %371
    %v373 = vsel %vm357, %v369, 0.0
    %374 = vadd.xlane.f32.xlu0 %v373
    %v375 = vpop.xlane.xlu0 %374
    %v376 = vrcp.pop %v372
    %v377 = vmul.f32 %v367, %v376
    %v378 = vrcp.pop %v375
    %v379 = vmul.f32 %v369, %v378
    %380 = vst.msk [vmem:[#allocation4] sm:$0x3] %vm357, %v377
    %381 = vst.msk [vmem:[#allocation4 + $0x2] sm:$0x3] %vm357, %v379
    %vm382 = vcmask 64512
    %v384 = vsel %vm382, %v377, 0
    %386 = vmatprep.subr.mxu0 0.0
    %387 = vmatpush1.msra.mxu0 %v33
    %388 = vmatprep.subr.mxu0 0.0
    %389 = vmatpush1.msra.mxu0 0.0
    %390 = vmatprep.subr.mxu0 0.0
    %391 = vmatpush1.msra.mxu0 0.0
    %392 = vmatprep.subr.mxu0 0.0
    %393 = vmatpush1.msra.mxu0 0.0
    %394 = vmatprep.subr.mxu0 0.0
    %395 = vmatpush1.msra.mxu0 0.0
    %396 = vmatprep.subr.mxu0 0.0
    %397 = vmatpush1.msra.mxu0 0.0
    %398 = vmatprep.subr.mxu0 0.0
    %399 = vmatpush1.msra.mxu0 0.0
    %400 = vmatprep.subr.mxu0 0.0
    %401 = vmatpush1.msra.mxu0 0.0
    %402 = vmatprep.subr.mxu0 0.0
    %403 = vmatpush1.msra.mxu0 0.0
    %404 = vmatprep.subr.mxu0 0.0
    %405 = vmatpush1.msra.mxu0 0.0
    %406 = vmatprep.subr.mxu0 0.0
    %407 = vmatpush1.msra.mxu0 0.0
    %408 = vmatprep.subr.mxu0 0.0
    %409 = vmatpush1.msra.mxu0 0.0
    %410 = vmatprep.subr.mxu0 0.0
    %411 = vmatpush1.msra.mxu0 0.0
    %412 = vmatprep.subr.mxu0 0.0
    %413 = vmatpush1.msra.mxu0 0.0
    %414 = vmatprep.subr.mxu0 0.0
    %415 = vmatpush1.msra.mxu0 0.0
    %416 = vmatprep.subr.mxu0 0.0
    %417 = vmatpush1.msra.mxu0 0.0
    %418 = vmatprep.subr.mxu0 0.0
    %419 = vmatpush1.msra.mxu0 0.0
    %420 = vmatprep.subr.mxu0 0.0
    %421 = vmatpush1.msra.mxu0 0.0
    %422 = vmatprep.subr.mxu0 0.0
    %423 = vmatpush1.msra.mxu0 0.0
    %424 = vmatprep.subr.mxu0 0.0
    %425 = vmatpush1.msra.mxu0 0.0
    %426 = vmatprep.subr.mxu0 0.0
    %427 = vmatpush1.msra.mxu0 0.0
    %428 = vmatprep.subr.mxu0 0.0
    %429 = vmatpush1.msra.mxu0 0.0
    %430 = vmatprep.subr.mxu0 0.0
    %431 = vmatpush1.msra.mxu0 0.0
    %432 = vmatprep.subr.mxu0 0.0
    %433 = vmatpush1.msra.mxu0 0.0
    %434 = vmatprep.subr.mxu0 0.0
    %435 = vmatpush1.msra.mxu0 0.0
    %436 = vmatprep.subr.mxu0 0.0
    %437 = vmatpush1.msra.mxu0 0.0
    %438 = vmatprep.subr.mxu0 0.0
    %439 = vmatpush1.msra.mxu0 0.0
    %440 = vmatprep.subr.mxu0 0.0
    %441 = vmatpush1.msra.mxu0 0.0
    %442 = vmatprep.subr.mxu0 0.0
    %443 = vmatpush1.msra.mxu0 0.0
    %444 = vmatprep.subr.mxu0 0.0
    %445 = vmatpush1.msra.mxu0 0.0
    %446 = vmatprep.subr.mxu0 0.0
    %447 = vmatpush1.msra.mxu0 0.0
    %448 = vmatprep.subr.mxu0 0.0
    %449 = vmatpush1.msra.mxu0 0.0
    %450 = vmatprep.mubr.f32.mxu0 0.0
    %451 = vmatmul.mubr.f32.gmra.mrb[0].mxu0 %v384
    %v452 = vpop.f32.mrb[0].mxu0
    %v453 = vadd.f32 0.0, %v452
    %v454 = vpop.f32.mrb[0].mxu0
    %455 = vdwg.mxu0
    %v457 = vsel %vm382, %v379, 0
    %459 = vmatprep.subr.mxu0 0.0
    %460 = vmatpush1.msra.mxu0 %v34
    %461 = vmatprep.subr.mxu0 0.0
    %462 = vmatpush1.msra.mxu0 0.0
    %463 = vmatprep.subr.mxu0 0.0
    %464 = vmatpush1.msra.mxu0 0.0
    %465 = vmatprep.subr.mxu0 0.0
    %466 = vmatpush1.msra.mxu0 0.0
    %467 = vmatprep.subr.mxu0 0.0
    %468 = vmatpush1.msra.mxu0 0.0
    %469 = vmatprep.subr.mxu0 0.0
    %470 = vmatpush1.msra.mxu0 0.0
    %471 = vmatprep.subr.mxu0 0.0
    %472 = vmatpush1.msra.mxu0 0.0
    %473 = vmatprep.subr.mxu0 0.0
    %474 = vmatpush1.msra.mxu0 0.0
    %475 = vmatprep.subr.mxu0 0.0
    %476 = vmatpush1.msra.mxu0 0.0
    %477 = vmatprep.subr.mxu0 0.0
    %478 = vmatpush1.msra.mxu0 0.0
    %479 = vmatprep.subr.mxu0 0.0
    %480 = vmatpush1.msra.mxu0 0.0
    %481 = vmatprep.subr.mxu0 0.0
    %482 = vmatpush1.msra.mxu0 0.0
    %483 = vmatprep.subr.mxu0 0.0
    %484 = vmatpush1.msra.mxu0 0.0
    %485 = vmatprep.subr.mxu0 0.0
    %486 = vmatpush1.msra.mxu0 0.0
    %487 = vmatprep.subr.mxu0 0.0
    %488 = vmatpush1.msra.mxu0 0.0
    %489 = vmatprep.subr.mxu0 0.0
    %490 = vmatpush1.msra.mxu0 0.0
    %491 = vmatprep.subr.mxu0 0.0
    %492 = vmatpush1.msra.mxu0 0.0
    %493 = vmatprep.subr.mxu0 0.0
    %494 = vmatpush1.msra.mxu0 0.0
    %495 = vmatprep.subr.mxu0 0.0
    %496 = vmatpush1.msra.mxu0 0.0
    %497 = vmatprep.subr.mxu0 0.0
    %498 = vmatpush1.msra.mxu0 0.0
    %499 = vmatprep.subr.mxu0 0.0
    %500 = vmatpush1.msra.mxu0 0.0
    %501 = vmatprep.subr.mxu0 0.0
    %502 = vmatpush1.msra.mxu0 0.0
    %503 = vmatprep.subr.mxu0 0.0
    %504 = vmatpush1.msra.mxu0 0.0
    %505 = vmatprep.subr.mxu0 0.0
    %506 = vmatpush1.msra.mxu0 0.0
    %507 = vmatprep.subr.mxu0 0.0
    %508 = vmatpush1.msra.mxu0 0.0
    %509 = vmatprep.subr.mxu0 0.0
    %510 = vmatpush1.msra.mxu0 0.0
    %511 = vmatprep.subr.mxu0 0.0
    %512 = vmatpush1.msra.mxu0 0.0
    %513 = vmatprep.subr.mxu0 0.0
    %514 = vmatpush1.msra.mxu0 0.0
    %515 = vmatprep.subr.mxu0 0.0
    %516 = vmatpush1.msra.mxu0 0.0
    %517 = vmatprep.subr.mxu0 0.0
    %518 = vmatpush1.msra.mxu0 0.0
    %519 = vmatprep.subr.mxu0 0.0
    %520 = vmatpush1.msra.mxu0 0.0
    %521 = vmatprep.subr.mxu0 0.0
    %522 = vmatpush1.msra.mxu0 0.0
    %523 = vmatprep.mubr.f32.mxu0 0.0
    %524 = vmatmul.mubr.f32.gmra.mrb[0].mxu0 %v457
    %v525 = vpop.f32.mrb[0].mxu0
    %v526 = vadd.f32 0.0, %v525
    %v527 = vpop.f32.mrb[0].mxu0
    %528 = vdwg.mxu0
    %v529 = vld [vmem:[%s5] sm:$0x1]
    %v530 = vld [vmem:[%s4] sm:$0xff]
    %v531 = vld [vmem:[%s4 + $0x8] sm:$0xff]
    %v532 = vld [vmem:[%s4 + $0x10] sm:$0xff]
    %v533 = vld [vmem:[%s4 + $0x18] sm:$0xff]
    %v534 = vld [vmem:[%s4 + $0x20] sm:$0xff]
    %v535 = vld [vmem:[%s4 + $0x28] sm:$0xff]
    %v536 = vld [vmem:[%s4 + $0x30] sm:$0xff]
    %v537 = vld [vmem:[%s4 + $0x38] sm:$0xff]
    %s538 = scalar_lea.vmem %s4, 64
    %v539 = vld [vmem:[%s538] sm:$0xff]
    %v540 = vld [vmem:[%s538 + $0x8] sm:$0xff]
    %v541 = vld [vmem:[%s538 + $0x10] sm:$0xff]
    %v542 = vld [vmem:[%s538 + $0x18] sm:$0xff]
    %v543 = vld [vmem:[%s538 + $0x20] sm:$0xff]
    %v544 = vld [vmem:[%s538 + $0x28] sm:$0xff]
    %v545 = vld [vmem:[%s538 + $0x30] sm:$0xff]
    %v546 = vld [vmem:[%s538 + $0x38] sm:$0xff]
    %v549 = vrot.slane %v453, 1
    %vm550 = vcmask 1041409
    %v551 = vsel %vm550, %v526, %v549
    %v552 = vsel %vm43, %v551, 0
    %554 = vmatprep.subr.mxu0 0.0
    %555 = vmatpush1.msra.mxu0 %v539
    %556 = vmatprep.subr.mxu0 0.0
    %557 = vmatpush1.msra.mxu0 %v540
    %558 = vmatprep.subr.mxu0 0.0
    %559 = vmatpush1.msra.mxu0 %v541
    %560 = vmatprep.subr.mxu0 0.0
    %561 = vmatpush1.msra.mxu0 %v542
    %562 = vmatprep.subr.mxu0 0.0
    %563 = vmatpush1.msra.mxu0 %v543
    %564 = vmatprep.subr.mxu0 0.0
    %565 = vmatpush1.msra.mxu0 %v544
    %566 = vmatprep.subr.mxu0 0.0
    %567 = vmatpush1.msra.mxu0 %v545
    %568 = vmatprep.subr.mxu0 0.0
    %569 = vmatpush1.msra.mxu0 %v546
    %570 = vmatprep.subr.mxu0 0.0
    %571 = vmatpush1.msra.mxu0 0.0
    %572 = vmatprep.subr.mxu0 0.0
    %573 = vmatpush1.msra.mxu0 0.0
    %574 = vmatprep.subr.mxu0 0.0
    %575 = vmatpush1.msra.mxu0 0.0
    %576 = vmatprep.subr.mxu0 0.0
    %577 = vmatpush1.msra.mxu0 0.0
    %578 = vmatprep.subr.mxu0 0.0
    %579 = vmatpush1.msra.mxu0 0.0
    %580 = vmatprep.subr.mxu0 0.0
    %581 = vmatpush1.msra.mxu0 0.0
    %582 = vmatprep.subr.mxu0 0.0
    %583 = vmatpush1.msra.mxu0 0.0
    %584 = vmatprep.subr.mxu0 0.0
    %585 = vmatpush1.msra.mxu0 0.0
    %586 = vmatprep.subr.mxu0 0.0
    %587 = vmatpush1.msra.mxu0 0.0
    %588 = vmatprep.subr.mxu0 0.0
    %589 = vmatpush1.msra.mxu0 0.0
    %590 = vmatprep.subr.mxu0 0.0
    %591 = vmatpush1.msra.mxu0 0.0
    %592 = vmatprep.subr.mxu0 0.0
    %593 = vmatpush1.msra.mxu0 0.0
    %594 = vmatprep.subr.mxu0 0.0
    %595 = vmatpush1.msra.mxu0 0.0
    %596 = vmatprep.subr.mxu0 0.0
    %597 = vmatpush1.msra.mxu0 0.0
    %598 = vmatprep.subr.mxu0 0.0
    %599 = vmatpush1.msra.mxu0 0.0
    %600 = vmatprep.subr.mxu0 0.0
    %601 = vmatpush1.msra.mxu0 0.0
    %602 = vmatprep.subr.mxu0 0.0
    %603 = vmatpush1.msra.mxu0 0.0
    %604 = vmatprep.subr.mxu0 0.0
    %605 = vmatpush1.msra.mxu0 0.0
    %606 = vmatprep.subr.mxu0 0.0
    %607 = vmatpush1.msra.mxu0 0.0
    %608 = vmatprep.subr.mxu0 0.0
    %609 = vmatpush1.msra.mxu0 0.0
    %610 = vmatprep.subr.mxu0 0.0
    %611 = vmatpush1.msra.mxu0 0.0
    %612 = vmatprep.subr.mxu0 0.0
    %613 = vmatpush1.msra.mxu0 0.0
    %614 = vmatprep.subr.mxu0 0.0
    %615 = vmatpush1.msra.mxu0 0.0
    %616 = vmatprep.subr.mxu0 0.0
    %617 = vmatpush1.msra.mxu0 0.0
    %618 = vmatprep.mubr.f32.mxu0 0.0
    %619 = vmatmul.mubr.f32.gmra.mrb[0].mxu0 %v552
    %v620 = vpop.f32.mrb[0].mxu0
    %v621 = vadd.f32 0.0, %v620
    %v622 = vpop.f32.mrb[0].mxu0
    %623 = vdwg.mxu0
    %v624 = vrot.slane %v526, 7
    %v625 = vsel %vm550, %v624, %v453
    %v626 = vsel %vm43, %v625, 0
    %628 = vmatprep.subr.mxu0 0.0
    %629 = vmatpush1.msra.mxu0 %v530
    %630 = vmatprep.subr.mxu0 0.0
    %631 = vmatpush1.msra.mxu0 %v531
    %632 = vmatprep.subr.mxu0 0.0
    %633 = vmatpush1.msra.mxu0 %v532
    %634 = vmatprep.subr.mxu0 0.0
    %635 = vmatpush1.msra.mxu0 %v533
    %636 = vmatprep.subr.mxu0 0.0
    %637 = vmatpush1.msra.mxu0 %v534
    %638 = vmatprep.subr.mxu0 0.0
    %639 = vmatpush1.msra.mxu0 %v535
    %640 = vmatprep.subr.mxu0 0.0
    %641 = vmatpush1.msra.mxu0 %v536
    %642 = vmatprep.subr.mxu0 0.0
    %643 = vmatpush1.msra.mxu0 %v537
    %644 = vmatprep.subr.mxu0 0.0
    %645 = vmatpush1.msra.mxu0 0.0
    %646 = vmatprep.subr.mxu0 0.0
    %647 = vmatpush1.msra.mxu0 0.0
    %648 = vmatprep.subr.mxu0 0.0
    %649 = vmatpush1.msra.mxu0 0.0
    %650 = vmatprep.subr.mxu0 0.0
    %651 = vmatpush1.msra.mxu0 0.0
    %652 = vmatprep.subr.mxu0 0.0
    %653 = vmatpush1.msra.mxu0 0.0
    %654 = vmatprep.subr.mxu0 0.0
    %655 = vmatpush1.msra.mxu0 0.0
    %656 = vmatprep.subr.mxu0 0.0
    %657 = vmatpush1.msra.mxu0 0.0
    %658 = vmatprep.subr.mxu0 0.0
    %659 = vmatpush1.msra.mxu0 0.0
    %660 = vmatprep.subr.mxu0 0.0
    %661 = vmatpush1.msra.mxu0 0.0
    %662 = vmatprep.subr.mxu0 0.0
    %663 = vmatpush1.msra.mxu0 0.0
    %664 = vmatprep.subr.mxu0 0.0
    %665 = vmatpush1.msra.mxu0 0.0
    %666 = vmatprep.subr.mxu0 0.0
    %667 = vmatpush1.msra.mxu0 0.0
    %668 = vmatprep.subr.mxu0 0.0
    %669 = vmatpush1.msra.mxu0 0.0
    %670 = vmatprep.subr.mxu0 0.0
    %671 = vmatpush1.msra.mxu0 0.0
    %672 = vmatprep.subr.mxu0 0.0
    %673 = vmatpush1.msra.mxu0 0.0
    %674 = vmatprep.subr.mxu0 0.0
    %675 = vmatpush1.msra.mxu0 0.0
    %676 = vmatprep.subr.mxu0 0.0
    %677 = vmatpush1.msra.mxu0 0.0
    %678 = vmatprep.subr.mxu0 0.0
    %679 = vmatpush1.msra.mxu0 0.0
    %680 = vmatprep.subr.mxu0 0.0
    %681 = vmatpush1.msra.mxu0 0.0
    %682 = vmatprep.subr.mxu0 0.0
    %683 = vmatpush1.msra.mxu0 0.0
    %684 = vmatprep.subr.mxu0 0.0
    %685 = vmatpush1.msra.mxu0 0.0
    %686 = vmatprep.subr.mxu0 0.0
    %687 = vmatpush1.msra.mxu0 0.0
    %688 = vmatprep.subr.mxu0 0.0
    %689 = vmatpush1.msra.mxu0 0.0
    %690 = vmatprep.subr.mxu0 0.0
    %691 = vmatpush1.msra.mxu0 0.0
    %692 = vmatprep.mubr.f32.mxu0 0.0
    %693 = vmatmul.mubr.f32.gmra.mrb[0].mxu0 %v626
    %v694 = vpop.f32.mrb[0].mxu0
    %v695 = vadd.f32 %v621, %v694
    %v696 = vpop.f32.mrb[0].mxu0
    %697 = vdwg.mxu0
    %v699 = vlaneseq
    %v700 = vshrl.u32 %v699, 7
    %v701 = vsub.s32 0, %v700
    %v702 = vrot.slane %v529, %v701
    %v704 = vadd.f32 %v695, %v702
    %v705 = vtanh.pop %v704
    %v706 = vld [vmem:[%s6] sm:$0xff]
    %v707 = vld [vmem:[%s6 + $0x8] sm:$0xff]
    %v708 = vld [vmem:[%s6 + $0x10] sm:$0xff]
    %v709 = vld [vmem:[%s6 + $0x18] sm:$0xff]
    %v710 = vld [vmem:[%s7] sm:$0x1]
    %v712 = vlaneseq
    %v713 = vshrl.u32 %v712, 7
    %v714 = vsub.s32 0, %v713
    %v715 = vrot.slane %v710, %v714
    %v718 = vsel %vm207, %v705, 0
    %720 = vmatprep.subr.mxu0 0.0
    %721 = vmatpush1.msra.mxu0 %v706
    %722 = vmatprep.subr.mxu0 0.0
    %723 = vmatpush1.msra.mxu0 %v707
    %724 = vmatprep.subr.mxu0 0.0
    %725 = vmatpush1.msra.mxu0 %v708
    %726 = vmatprep.subr.mxu0 0.0
    %727 = vmatpush1.msra.mxu0 %v709
    %728 = vmatprep.subr.mxu0 0.0
    %729 = vmatpush1.msra.mxu0 0.0
    %730 = vmatprep.subr.mxu0 0.0
    %731 = vmatpush1.msra.mxu0 0.0
    %732 = vmatprep.subr.mxu0 0.0
    %733 = vmatpush1.msra.mxu0 0.0
    %734 = vmatprep.subr.mxu0 0.0
    %735 = vmatpush1.msra.mxu0 0.0
    %736 = vmatprep.subr.mxu0 0.0
    %737 = vmatpush1.msra.mxu0 0.0
    %738 = vmatprep.subr.mxu0 0.0
    %739 = vmatpush1.msra.mxu0 0.0
    %740 = vmatprep.subr.mxu0 0.0
    %741 = vmatpush1.msra.mxu0 0.0
    %742 = vmatprep.subr.mxu0 0.0
    %743 = vmatpush1.msra.mxu0 0.0
    %744 = vmatprep.subr.mxu0 0.0
    %745 = vmatpush1.msra.mxu0 0.0
    %746 = vmatprep.subr.mxu0 0.0
    %747 = vmatpush1.msra.mxu0 0.0
    %748 = vmatprep.subr.mxu0 0.0
    %749 = vmatpush1.msra.mxu0 0.0
    %750 = vmatprep.subr.mxu0 0.0
    %751 = vmatpush1.msra.mxu0 0.0
    %752 = vmatprep.subr.mxu0 0.0
    %753 = vmatpush1.msra.mxu0 0.0
    %754 = vmatprep.subr.mxu0 0.0
    %755 = vmatpush1.msra.mxu0 0.0
    %756 = vmatprep.subr.mxu0 0.0
    %757 = vmatpush1.msra.mxu0 0.0
    %758 = vmatprep.subr.mxu0 0.0
    %759 = vmatpush1.msra.mxu0 0.0
    %760 = vmatprep.subr.mxu0 0.0
    %761 = vmatpush1.msra.mxu0 0.0
    %762 = vmatprep.subr.mxu0 0.0
    %763 = vmatpush1.msra.mxu0 0.0
    %764 = vmatprep.subr.mxu0 0.0
    %765 = vmatpush1.msra.mxu0 0.0
    %766 = vmatprep.subr.mxu0 0.0
    %767 = vmatpush1.msra.mxu0 0.0
    %768 = vmatprep.subr.mxu0 0.0
    %769 = vmatpush1.msra.mxu0 0.0
    %770 = vmatprep.subr.mxu0 0.0
    %771 = vmatpush1.msra.mxu0 0.0
    %772 = vmatprep.subr.mxu0 0.0
    %773 = vmatpush1.msra.mxu0 0.0
    %774 = vmatprep.subr.mxu0 0.0
    %775 = vmatpush1.msra.mxu0 0.0
    %776 = vmatprep.subr.mxu0 0.0
    %777 = vmatpush1.msra.mxu0 0.0
    %778 = vmatprep.subr.mxu0 0.0
    %779 = vmatpush1.msra.mxu0 0.0
    %780 = vmatprep.subr.mxu0 0.0
    %781 = vmatpush1.msra.mxu0 0.0
    %782 = vmatprep.subr.mxu0 0.0
    %783 = vmatpush1.msra.mxu0 0.0
    %784 = vmatprep.mubr.f32.mxu0 0.0
    %785 = vmatmul.mubr.f32.gmra.mrb[0].mxu0 %v718
    %v786 = vpop.f32.mrb[0].mxu0
    %v787 = vadd.f32 %v715, %v786
    %v788 = vpop.f32.mrb[0].mxu0
    %789 = vdwg.mxu0
    %vm790 = vcmask 17408
    %791 = vst.msk [vmem:[#allocation2] sm:$0x3] %vm790, %v787
    // Predicated region
    $region34: #{rnnsa_forward.5} parent=1 // pred_check
      _
    $region35: #{rnnsa_forward.5} parent=1 // pred_check_branch
      %793 = sbr.rel (0) target = $region37
    $region36: #{rnnsa_forward.5} parent=1 // pred_region
      %s795 = ssub.s32 32, 32
      %796 = vsyncadd [#allocation3], %s795
      %s798 = sshll.u32 [#allocation2], 4
      %s799 = int_to_ptr.vmem [resolvable:$true] %s798
      %801 = dma.vmem_to_hbm [thread:$0]  %s799, 32, %s8, [#allocation3]
    $region37: #{rnnsa_forward.5} parent=1 // pred_fallthru
      _
    // Predicated region
    $region38: #{rnnsa_forward.5} parent=1 // pred_check
      _
    $region39: #{rnnsa_forward.5} parent=1 // pred_check_branch
      %803 = sbr.rel (0) target = $region41
    $region40: #{rnnsa_forward.5} parent=1 // pred_region
      %s805 = ssub.s32 64, 64
      %806 = vsyncadd [#allocation5], %s805
      %s807 = sshll.u32 [#allocation4], 4
      %s808 = int_to_ptr.vmem [resolvable:$true] %s807
      %813 = dma.vmem_to_hbm [thread:$0]  %s808, 64, %s9, [#allocation5], 32, 32, 2
    $region41: #{rnnsa_forward.5} parent=1 // pred_fallthru
      _
    // Predicated region
    $region42: #{rnnsa_forward.5} parent=1 // pred_check
      _
    $region43: #{rnnsa_forward.5} parent=1 // pred_check_branch
      %815 = sbr.rel (0) target = $region45
    $region44: #{rnnsa_forward.5} parent=1 // pred_region
      %816 = dma.done [#allocation3], 32
    $region45: #{rnnsa_forward.5} parent=1 // pred_fallthru
      _
    // Predicated region
    $region46: #{rnnsa_forward.5} parent=1 // pred_check
      _
    $region47: #{rnnsa_forward.5} parent=1 // pred_check_branch
      %818 = sbr.rel (0) target = $region49
    $region48: #{rnnsa_forward.5} parent=1 // pred_region
      %819 = dma.done [#allocation5], 64
    $region49: #{rnnsa_forward.5} parent=1 // pred_fallthru
      _
    %820 = vsyncpa [#allocation3], 1
    %821 = vsyncpa [#allocation5], 1

// kernel: rnnsa_forward.3
$region0: #{rnnsa_forward.3}
  #allocation0 [shape = 'u32[]', space=smem, size = 0x4, offset = 0x4, fixed_abs, tag = 'smem constant byte address 0x4 - core index']
  #allocation1 [shape = 'u32[144,128]{1,0:T(1,128)}', space=vmem, size = 0x12000, scoped, tag = 'internal scratch']
  #allocation2 [shape = 'f32[2,2,32]{2,1,0:T(2,128)}', space=vmem, size = 0x800, scoped, tag = 'scratch operand']
  #allocation3 [shape = 'f32[2,2,32]{2,1,0:T(2,128)}', space=vmem, size = 0x800, scoped, tag = 'scratch operand']
  %s0 = inlined_call_operand.vmem [shape: f32[2,8,2,128], index: 0, kind: input, shape index: {}]
  %s1 = inlined_call_operand.vmem [shape: f32[2,32,128], index: 1, kind: input, shape index: {}]
  %s2 = inlined_call_operand.vmem [shape: f32[2,8,2,32], index: 2, kind: output, shape index: {}]
  %s3 = sld [smem:[#allocation0]]
  $region45: #{rnnsa_forward.3} parent=0
    _
  %s5 = ssub.s32 1, %s3
  %s6 = scalar_select 0, %s5, %s3
  loop: start=0, step=1, limit=4
  $region2: #{rnnsa_forward.3} parent=0 // loop_pre_header
    _
  $region3: #{rnnsa_forward.3} parent=0 // loop_header
    %s8 = sphi 0, %s12
    %p9 = scmp.ge.s32.totalorder %s8, 4
    %s15 = sphi 0, %s27
    %s16 = sphi 0, %s23
    %s17 = sphi 0, %s15
    %s18 = sphi 0, %s16
    %s19 = sphi 0, %s17
    %s20 = sphi 0, %s18
    %s40 = sphi 0, %s42
    %s43 = sphi 0, %s40
    %s44 = sphi 0, %s43
    %s60 = sphi 0, %s44
    %s66 = sphi 0, %s68
    %s69 = sphi 0, %s66
    %s70 = sphi 0, %s69
    %s86 = sphi 0, %s70
    %s102 = sphi 0, %s104
    %s105 = sphi 0, %s102
    %s106 = sphi 0, %s105
    %s122 = sphi 0, %s106
  $region4: #{rnnsa_forward.3} parent=0 // loop_header_branch
    %11 = sbr.rel (%p9) target = $region8
  $region5: #{rnnsa_forward.3} parent=0 // loop_body
    %s13 = ssub.s32 %s8, 1
    %s14 = ssub.s32 %s8, 2
    %s21 = sadd.s32 1, %s16
    %p22 = scmp.ge.s32.totalorder %s21, 1
    %s23 = scalar_select %p22, 0, %s21
    %s24 = sadd.s32 1, %s15
    %s25 = scalar_select %p22, %s24, %s15
    %p26 = scmp.ge.s32.totalorder %s25, 2
    %s27 = scalar_select %p26, 0, %s25
    %s28 = smul.u32 %s16, 2
    %s29 = ssub.s32 0, %s28
    %s30 = smul.u32 %s15, %s29
    %s31 = sadd.s32 %s16, %s30
    %s32 = smul.u32 %s23, 2
    %s33 = ssub.s32 0, %s32
    %s34 = smul.u32 %s27, %s33
    %s35 = sadd.s32 %s23, %s34
    %s36 = ssub.s32 %s15, %s27
    %s37 = ssub.s32 %s31, %s35
    %s38 = sor.u32 %s36, %s37
    %p39 = scmp.eq.s32.totalorder %s38, 0
    %s41 = sadd.s32 %s40, 1
    %s42 = scalar_select %p39, %s40, %s41
    %p45 = pneg %p39
    %p46 = scmp.eq.s32.totalorder %s8, 1
    %p47 = por %p45, %p46
    %p48 = scmp.ne.s32.totalorder %s40, %s43
    %p49 = scmp.eq.s32.totalorder %s8, 0
    %p50 = por %p48, %p49
    %p51 = scmp.ne.s32.totalorder %s40, %s43
    %p52 = scmp.eq.s32.totalorder %s13, 1
    %p53 = por %p51, %p52
    %p54 = scmp.ne.s32.totalorder %s43, %s44
    %p55 = scmp.eq.s32.totalorder %s13, 0
    %p56 = por %p54, %p55
    %p57 = scmp.ne.s32.totalorder %s43, %s44
    %p58 = scmp.eq.s32.totalorder %s14, 1
    %p59 = por %p57, %p58
    %p61 = scmp.ne.s32.totalorder %s44, %s60
    %p62 = scmp.eq.s32.totalorder %s14, 0
    %p63 = por %p61, %p62
    %s64 = ssub.s32 %s15, %s27
    %p65 = scmp.eq.s32.totalorder %s64, 0
    %s67 = sadd.s32 %s66, 1
    %s68 = scalar_select %p65, %s66, %s67
    %p71 = pneg %p65
    %p72 = scmp.eq.s32.totalorder %s8, 1
    %p73 = por %p71, %p72
    %p74 = scmp.ne.s32.totalorder %s66, %s69
    %p75 = scmp.eq.s32.totalorder %s8, 0
    %p76 = por %p74, %p75
    %p77 = scmp.ne.s32.totalorder %s66, %s69
    %p78 = scmp.eq.s32.totalorder %s13, 1
    %p79 = por %p77, %p78
    %p80 = scmp.ne.s32.totalorder %s69, %s70
    %p81 = scmp.eq.s32.totalorder %s13, 0
    %p82 = por %p80, %p81
    %p83 = scmp.ne.s32.totalorder %s69, %s70
    %p84 = scmp.eq.s32.totalorder %s14, 1
    %p85 = por %p83, %p84
    %p87 = scmp.ne.s32.totalorder %s70, %s86
    %p88 = scmp.eq.s32.totalorder %s14, 0
    %p89 = por %p87, %p88
    %s90 = smul.u32 %s16, 2
    %s91 = ssub.s32 0, %s90
    %s92 = smul.u32 %s15, %s91
    %s93 = sadd.s32 %s16, %s92
    %s94 = smul.u32 %s23, 2
    %s95 = ssub.s32 0, %s94
    %s96 = smul.u32 %s27, %s95
    %s97 = sadd.s32 %s23, %s96
    %s98 = ssub.s32 %s15, %s27
    %s99 = ssub.s32 %s93, %s97
    %s100 = sor.u32 %s98, %s99
    %p101 = scmp.eq.s32.totalorder %s100, 0
    %s103 = sadd.s32 %s102, 1
    %s104 = scalar_select %p101, %s102, %s103
    %p107 = pneg %p101
    %p108 = scmp.eq.s32.totalorder %s8, 1
    %p109 = por %p107, %p108
    %p110 = scmp.ne.s32.totalorder %s102, %s105
    %p111 = scmp.eq.s32.totalorder %s8, 0
    %p112 = por %p110, %p111
    %p113 = scmp.ne.s32.totalorder %s102, %s105
    %p114 = scmp.eq.s32.totalorder %s13, 1
    %p115 = por %p113, %p114
    %p116 = scmp.ne.s32.totalorder %s105, %s106
    %p117 = scmp.eq.s32.totalorder %s13, 0
    %p118 = por %p116, %p117
    %p119 = scmp.ne.s32.totalorder %s105, %s106
    %p120 = scmp.eq.s32.totalorder %s14, 1
    %p121 = por %p119, %p120
    %p123 = scmp.ne.s32.totalorder %s106, %s122
    %p124 = scmp.eq.s32.totalorder %s14, 0
    %p125 = por %p123, %p124
    %p126 = scmp.le.s32.totalorder 1, %s8
    %p127 = scmp.lt.s32.totalorder %s8, 3
    %p128 = pnand %p126, %p127
    %p129 = pneg %p128
    // Predicated region
    $region9: #{rnnsa_forward.3} parent=5 // pred_check
      _
    $region10: #{rnnsa_forward.3} parent=5 // pred_check_branch
      %131 = sbr.rel (%p128) target = $region12
    $region11: #{rnnsa_forward.3} parent=5 // pred_region
      %s132 = ssub.s32 %s8, 1
    $region12: #{rnnsa_forward.3} parent=5 // pred_fallthru
      _
    %p133 = scmp.lt.s32.totalorder %s8, 2
    // Predicated region
    $region13: #{rnnsa_forward.3} parent=5 // pred_check
      %p134 = pneg %p133
    $region14: #{rnnsa_forward.3} parent=5 // pred_check_branch
      %136 = sbr.rel (%p134) target = $region16
    $region15: #{rnnsa_forward.3} parent=5 // pred_region
      // Predicated region
      $region17: #{rnnsa_forward.3} parent=15 // pred_check
        %p137 = pneg %p50
      $region18: #{rnnsa_forward.3} parent=15 // pred_check_branch
        %139 = sbr.rel (%p137) target = $region20
      $region19: #{rnnsa_forward.3} parent=15 // pred_region
        %s140 = smul.u32 %s16, 2
        %s141 = ssub.s32 0, %s140
        %s142 = smul.u32 %s15, %s141
        %s143 = sadd.s32 %s16, %s142
        %s144 = smul.u32 8, %s143
        %p145 = scmp.lt.s32.totalorder %s15, 1
        %s146 = scalar_select %p145, %s15, 1
        %p147 = scmp.lt.s32.totalorder %s144, 7
        %s148 = scalar_select %p147, %s144, 7
        %s149 = smul.addr %s146, 8
        %s150 = sadd.s32 %s148, %s149
        %s151 = smul.addr %s150, 2
        %s152 = scalar_lea.vmem %s0, %s151
        %s153 = smul.u32 %s16, 2
        %s154 = ssub.s32 0, %s153
        %s155 = smul.u32 %s15, %s154
        %s156 = sadd.s32 %s16, %s155
        %s157 = smul.u32 8, %s156
      $region20: #{rnnsa_forward.3} parent=15 // pred_fallthru
        _
      // Predicated region
      $region21: #{rnnsa_forward.3} parent=15 // pred_check
        %p158 = pneg %p76
      $region22: #{rnnsa_forward.3} parent=15 // pred_check_branch
        %160 = sbr.rel (%p158) target = $region24
      $region23: #{rnnsa_forward.3} parent=15 // pred_region
        %p161 = scmp.lt.s32.totalorder %s15, 1
        %s162 = scalar_select %p161, %s15, 1
        %s163 = smul.addr %s162, 4
        %s164 = smul.addr %s163, 8
        %s165 = scalar_lea.vmem %s1, %s164
      $region24: #{rnnsa_forward.3} parent=15 // pred_fallthru
        _
    $region16: #{rnnsa_forward.3} parent=5 // pred_fallthru
      _
    %p166 = scmp.le.s32.totalorder 1, %s8
    %p167 = scmp.lt.s32.totalorder %s8, 3
    %p168 = pnand %p166, %p167
    %p169 = pneg %p168
    // Predicated region
    $region25: #{rnnsa_forward.3} parent=5 // pred_check
      _
    $region26: #{rnnsa_forward.3} parent=5 // pred_check_branch
      %171 = sbr.rel (%p168) target = $region28
    $region27: #{rnnsa_forward.3} parent=5 // pred_region
      %s172 = ssub.s32 %s8, 1
      %s173 = smul.u32 %s18, 2
      %s174 = ssub.s32 0, %s173
      %s175 = smul.u32 %s17, %s174
      %s176 = sadd.s32 %s18, %s175
      %s177 = smul.u32 8, %s176
      %p178 = scmp.lt.s32.totalorder %s17, 1
      %s179 = scalar_select %p178, %s17, 1
      %p180 = scmp.lt.s32.totalorder %s177, 7
      %s181 = scalar_select %p180, %s177, 7
      %s182 = smul.addr %s179, 8
      %s183 = sadd.s32 %s181, %s182
      %s184 = smul.addr %s183, 2
      %s185 = scalar_lea.vmem %s0, %s184
      %p186 = pneg %p56
      %p187 = pneg %p53
      %p188 = scmp.lt.s32.totalorder %s17, 1
      %s189 = scalar_select %p188, %s17, 1
      %s190 = smul.addr %s189, 4
      %s191 = smul.addr %s190, 8
      %s192 = scalar_lea.vmem %s1, %s191
      %p193 = pneg %p82
      %p194 = pneg %p79
      %p195 = pneg %p118
      %p196 = pneg %p115
      %s197 = smul.u32 %s18, 2
      %s198 = ssub.s32 0, %s197
      %s199 = smul.u32 %s17, %s198
      %s200 = sadd.s32 %s18, %s199
      %s201 = smul.u32 8, %s200
      %p202 = scmp.lt.s32.totalorder %s17, 1
      %s203 = scalar_select %p202, %s17, 1
      %p204 = scmp.lt.s32.totalorder %s201, 7
      %s205 = scalar_select %p204, %s201, 7
      %s206 = smul.addr %s203, 8
      %s207 = sadd.s32 %s205, %s206
      %s208 = smul.addr %s207, 2
      %s209 = scalar_lea.vmem %s2, %s208
      %s210 = smul.u32 %s18, 2
      %s211 = ssub.s32 0, %s210
      %s212 = smul.u32 %s17, %s211
      %s213 = sadd.s32 %s18, %s212
      %s214 = smul.u32 8, %s213
      %p215 = scmp.lt.s32.totalorder %s17, 1
      %s216 = scalar_select %p215, %s17, 1
      %p217 = scmp.lt.s32.totalorder %s214, 7
      %s218 = scalar_select %p217, %s214, 7
      %s219 = smul.addr %s216, 8
      %s220 = sadd.s32 %s218, %s219
      %s221 = smul.addr %s220, 2
      %s222 = scalar_lea.vmem %s0, %s221
      %s223 = smul.u32 %s18, 2
      %s224 = ssub.s32 0, %s223
      %s225 = smul.u32 %s17, %s224
      %s226 = sadd.s32 %s18, %s225
      %s227 = smul.u32 8, %s226
      %p228 = scmp.lt.s32.totalorder %s17, 1
      %s229 = scalar_select %p228, %s17, 1
      %s230 = smul.addr %s229, 4
      %s231 = smul.addr %s230, 8
      %s232 = scalar_lea.vmem %s1, %s231
      %s233 = smul.u32 %s18, 2
      %s234 = ssub.s32 0, %s233
      %s235 = smul.u32 %s17, %s234
      %s236 = sadd.s32 %s18, %s235
      %s237 = smul.u32 8, %s236
      %p238 = scmp.lt.s32.totalorder %s17, 1
      %s239 = scalar_select %p238, %s17, 1
      %p240 = scmp.lt.s32.totalorder %s237, 7
      %s241 = scalar_select %p240, %s237, 7
      %s242 = smul.addr %s239, 8
      %s243 = sadd.s32 %s241, %s242
      %s244 = smul.addr %s243, 2
      %s245 = scalar_lea.vmem %s2, %s244
      %s246 = smul.u32 %s18, 2
      %s247 = ssub.s32 0, %s246
      %s248 = smul.u32 %s17, %s247
      %s249 = sadd.s32 %s18, %s248
      %s250 = smul.u32 8, %s249
      %p251 = scmp.eq.s32.totalorder %s18, 0
      // Predicated region
      $region29: #{rnnsa_forward.3} parent=27 // pred_check
        %p252 = pneg %p251
      $region30: #{rnnsa_forward.3} parent=27 // pred_check_branch
        %254 = sbr.rel (%p252) target = $region32
      $region31: #{rnnsa_forward.3} parent=27 // pred_region
        %s255 = smul.u32 %s17, 2
        %s256 = scalar_lea.vmem [#allocation2], %s255
        %vm257 = vcmask 254976
        %258 = vst.msk [vmem:[%s256] sm:$0x3] %vm257, 0.0
        %s259 = scalar_lea.vmem [#allocation3], %s255
        %260 = vst.msk [vmem:[%s259] sm:$0x3] %vm257, 0.0
      $region32: #{rnnsa_forward.3} parent=27 // pred_fallthru
        _
      %v261 = vld [vmem:[%s232] sm:$0xff]
      %v262 = vld [vmem:[%s232 + $0x8] sm:$0xff]
      %v263 = vld [vmem:[%s232 + $0x10] sm:$0xff]
      %v264 = vld [vmem:[%s232 + $0x18] sm:$0xff]
      %s265 = smul.u32 %s17, 2
      %s266 = scalar_lea.vmem [#allocation2], %s265
      %v267 = vld [vmem:[%s266] sm:$0x3]
      %s268 = scalar_lea.vmem [#allocation3], %s265
      %v269 = vld [vmem:[%s268] sm:$0x3]
      %s270 = smul.u32 %s17, 7
      %s271 = smul.u32 %s270, 2
      %s272 = scalar_lea.vmem %s222, %s271
      %v273 = vld [vmem:[%s272] sm:$0x3]
      %vm274 = vcmask 261120
      %v276 = vsel %vm274, %v267, 0
      %278 = vmatprep.subr.mxu0 0.0
      %279 = vmatpush1.msra.mxu0 %v261
      %280 = vmatprep.subr.mxu0 0.0
      %281 = vmatpush1.msra.mxu0 %v262
      %282 = vmatprep.subr.mxu0 0.0
      %283 = vmatpush1.msra.mxu0 %v263
      %284 = vmatprep.subr.mxu0 0.0
      %285 = vmatpush1.msra.mxu0 %v264
      %286 = vmatprep.subr.mxu0 0.0
      %287 = vmatpush1.msra.mxu0 0.0
      %288 = vmatprep.subr.mxu0 0.0
      %289 = vmatpush1.msra.mxu0 0.0
      %290 = vmatprep.subr.mxu0 0.0
      %291 = vmatpush1.msra.mxu0 0.0
      %292 = vmatprep.subr.mxu0 0.0
      %293 = vmatpush1.msra.mxu0 0.0
      %294 = vmatprep.subr.mxu0 0.0
      %295 = vmatpush1.msra.mxu0 0.0
      %296 = vmatprep.subr.mxu0 0.0
      %297 = vmatpush1.msra.mxu0 0.0
      %298 = vmatprep.subr.mxu0 0.0
      %299 = vmatpush1.msra.mxu0 0.0
      %300 = vmatprep.subr.mxu0 0.0
      %301 = vmatpush1.msra.mxu0 0.0
      %302 = vmatprep.subr.mxu0 0.0
      %303 = vmatpush1.msra.mxu0 0.0
      %304 = vmatprep.subr.mxu0 0.0
      %305 = vmatpush1.msra.mxu0 0.0
      %306 = vmatprep.subr.mxu0 0.0
      %307 = vmatpush1.msra.mxu0 0.0
      %308 = vmatprep.subr.mxu0 0.0
      %309 = vmatpush1.msra.mxu0 0.0
      %310 = vmatprep.subr.mxu0 0.0
      %311 = vmatpush1.msra.mxu0 0.0
      %312 = vmatprep.subr.mxu0 0.0
      %313 = vmatpush1.msra.mxu0 0.0
      %314 = vmatprep.subr.mxu0 0.0
      %315 = vmatpush1.msra.mxu0 0.0
      %316 = vmatprep.subr.mxu0 0.0
      %317 = vmatpush1.msra.mxu0 0.0
      %318 = vmatprep.subr.mxu0 0.0
      %319 = vmatpush1.msra.mxu0 0.0
      %320 = vmatprep.subr.mxu0 0.0
      %321 = vmatpush1.msra.mxu0 0.0
      %322 = vmatprep.subr.mxu0 0.0
      %323 = vmatpush1.msra.mxu0 0.0
      %324 = vmatprep.subr.mxu0 0.0
      %325 = vmatpush1.msra.mxu0 0.0
      %326 = vmatprep.subr.mxu0 0.0
      %327 = vmatpush1.msra.mxu0 0.0
      %328 = vmatprep.subr.mxu0 0.0
      %329 = vmatpush1.msra.mxu0 0.0
      %330 = vmatprep.subr.mxu0 0.0
      %331 = vmatpush1.msra.mxu0 0.0
      %332 = vmatprep.subr.mxu0 0.0
      %333 = vmatpush1.msra.mxu0 0.0
      %334 = vmatprep.subr.mxu0 0.0
      %335 = vmatpush1.msra.mxu0 0.0
      %336 = vmatprep.subr.mxu0 0.0
      %337 = vmatpush1.msra.mxu0 0.0
      %338 = vmatprep.subr.mxu0 0.0
      %339 = vmatpush1.msra.mxu0 0.0
      %340 = vmatprep.subr.mxu0 0.0
      %341 = vmatpush1.msra.mxu0 0.0
      %342 = vmatprep.mubr.f32.mxu0 0.0
      %343 = vmatmul.mubr.f32.gmra.mrb[0].mxu0 %v276
      %v344 = vpop.f32.mrb[0].mxu0
      %v345 = vadd.f32 0.0, %v344
      %v346 = vpop.f32.mrb[0].mxu0
      %347 = vdwg.mxu0
      %v348 = vadd.f32 %v273, %v345
      %v349 = vxor.u32 %v348, 2147483648
      %v350 = vmul.f32 %v349, 1.442695
      %v351 = vpow.pop %v350
      %v352 = vadd.f32 %v351, 1.0
      %v353 = vrcp.pop %v352
      %v354 = vmul.f32 1.0, %v353
      %v355 = vtanh.pop %v348
      %357 = vrot.lane.b32.xlu0 %v269, 32
      %v358 = vpop.permute.xlu0 %357
      %v360 = vmul.f32 %v354, %v358
      %362 = vrot.lane.b32.xlu0 %v355, 64
      %v363 = vpop.permute.xlu0 %362
      %v365 = vmul.f32 %v354, %v363
      %367 = vrot.lane.b32.xlu0 %v365, 32
      %v368 = vpop.permute.xlu0 %367
      %v370 = vadd.f32 %v360, %v368
      %v371 = vtanh.pop %v370
      %373 = vrot.lane.b32.xlu0 %v371, 64
      %v374 = vpop.permute.xlu0 %373
      %v376 = vmul.f32 %v354, %v374
      %378 = vrot.lane.b32.xlu0 %v376, 32
      %v379 = vpop.permute.xlu0 %378
      %s381 = scalar_lea.vmem %s245, %s271
      %vm382 = vcmask 254976
      %383 = vst.msk [vmem:[%s381] sm:$0x3] %vm382, %v379
      %s384 = smul.u32 %s17, 5
      %s385 = sadd.s32 %s384, 1
      %s386 = smul.u32 %s385, 2
      %s387 = scalar_lea.vmem %s222, %s386
      %v388 = vld [vmem:[%s387] sm:$0x3]
      %v389 = vsel %vm274, %v379, 0
      %391 = vmatprep.subr.mxu0 0.0
      %392 = vmatpush1.msra.mxu0 %v261
      %393 = vmatprep.subr.mxu0 0.0
      %394 = vmatpush1.msra.mxu0 %v262
      %395 = vmatprep.subr.mxu0 0.0
      %396 = vmatpush1.msra.mxu0 %v263
      %397 = vmatprep.subr.mxu0 0.0
      %398 = vmatpush1.msra.mxu0 %v264
      %399 = vmatprep.subr.mxu0 0.0
      %400 = vmatpush1.msra.mxu0 0.0
      %401 = vmatprep.subr.mxu0 0.0
      %402 = vmatpush1.msra.mxu0 0.0
      %403 = vmatprep.subr.mxu0 0.0
      %404 = vmatpush1.msra.mxu0 0.0
      %405 = vmatprep.subr.mxu0 0.0
      %406 = vmatpush1.msra.mxu0 0.0
      %407 = vmatprep.subr.mxu0 0.0
      %408 = vmatpush1.msra.mxu0 0.0
      %409 = vmatprep.subr.mxu0 0.0
      %410 = vmatpush1.msra.mxu0 0.0
      %411 = vmatprep.subr.mxu0 0.0
      %412 = vmatpush1.msra.mxu0 0.0
      %413 = vmatprep.subr.mxu0 0.0
      %414 = vmatpush1.msra.mxu0 0.0
      %415 = vmatprep.subr.mxu0 0.0
      %416 = vmatpush1.msra.mxu0 0.0
      %417 = vmatprep.subr.mxu0 0.0
      %418 = vmatpush1.msra.mxu0 0.0
      %419 = vmatprep.subr.mxu0 0.0
      %420 = vmatpush1.msra.mxu0 0.0
      %421 = vmatprep.subr.mxu0 0.0
      %422 = vmatpush1.msra.mxu0 0.0
      %423 = vmatprep.subr.mxu0 0.0
      %424 = vmatpush1.msra.mxu0 0.0
      %425 = vmatprep.subr.mxu0 0.0
      %426 = vmatpush1.msra.mxu0 0.0
      %427 = vmatprep.subr.mxu0 0.0
      %428 = vmatpush1.msra.mxu0 0.0
      %429 = vmatprep.subr.mxu0 0.0
      %430 = vmatpush1.msra.mxu0 0.0
      %431 = vmatprep.subr.mxu0 0.0
      %432 = vmatpush1.msra.mxu0 0.0
      %433 = vmatprep.subr.mxu0 0.0
      %434 = vmatpush1.msra.mxu0 0.0
      %435 = vmatprep.subr.mxu0 0.0
      %436 = vmatpush1.msra.mxu0 0.0
      %437 = vmatprep.subr.mxu0 0.0
      %438 = vmatpush1.msra.mxu0 0.0
      %439 = vmatprep.subr.mxu0 0.0
      %440 = vmatpush1.msra.mxu0 0.0
      %441 = vmatprep.subr.mxu0 0.0
      %442 = vmatpush1.msra.mxu0 0.0
      %443 = vmatprep.subr.mxu0 0.0
      %444 = vmatpush1.msra.mxu0 0.0
      %445 = vmatprep.subr.mxu0 0.0
      %446 = vmatpush1.msra.mxu0 0.0
      %447 = vmatprep.subr.mxu0 0.0
      %448 = vmatpush1.msra.mxu0 0.0
      %449 = vmatprep.subr.mxu0 0.0
      %450 = vmatpush1.msra.mxu0 0.0
      %451 = vmatprep.subr.mxu0 0.0
      %452 = vmatpush1.msra.mxu0 0.0
      %453 = vmatprep.subr.mxu0 0.0
      %454 = vmatpush1.msra.mxu0 0.0
      %455 = vmatprep.mubr.f32.mxu0 0.0
      %456 = vmatmul.mubr.f32.gmra.mrb[0].mxu0 %v389
      %v457 = vpop.f32.mrb[0].mxu0
      %v458 = vadd.f32 0.0, %v457
      %v459 = vpop.f32.mrb[0].mxu0
      %460 = vdwg.mxu0
      %v461 = vadd.f32 %v388, %v458
      %v462 = vxor.u32 %v461, 2147483648
      %v463 = vmul.f32 %v462, 1.442695
      %v464 = vpow.pop %v463
      %v465 = vadd.f32 %v464, 1.0
      %v466 = vrcp.pop %v465
      %v467 = vmul.f32 1.0, %v466
      %v468 = vtanh.pop %v461
      %v469 = vmul.f32 %v467, %v370
      %471 = vrot.lane.b32.xlu0 %v468, 64
      %v472 = vpop.permute.xlu0 %471
      %v474 = vmul.f32 %v467, %v472
      %476 = vrot.lane.b32.xlu0 %v474, 32
      %v477 = vpop.permute.xlu0 %476
      %v479 = vadd.f32 %v469, %v477
      %v480 = vtanh.pop %v479
      %482 = vrot.lane.b32.xlu0 %v480, 64
      %v483 = vpop.permute.xlu0 %482
      %v485 = vmul.f32 %v467, %v483
      %487 = vrot.lane.b32.xlu0 %v485, 32
      %v488 = vpop.permute.xlu0 %487
      %s490 = scalar_lea.vmem %s245, %s386
      %491 = vst.msk [vmem:[%s490] sm:$0x3] %vm382, %v488
      %s492 = smul.u32 %s17, 3
      %s493 = sadd.s32 %s492, 2
      %s494 = smul.u32 %s493, 2
      %s495 = scalar_lea.vmem %s222, %s494
      %v496 = vld [vmem:[%s495] sm:$0x3]
      %v497 = vsel %vm274, %v488, 0
      %499 = vmatprep.subr.mxu0 0.0
      %500 = vmatpush1.msra.mxu0 %v261
      %501 = vmatprep.subr.mxu0 0.0
      %502 = vmatpush1.msra.mxu0 %v262
      %503 = vmatprep.subr.mxu0 0.0
      %504 = vmatpush1.msra.mxu0 %v263
      %505 = vmatprep.subr.mxu0 0.0
      %506 = vmatpush1.msra.mxu0 %v264
      %507 = vmatprep.subr.mxu0 0.0
      %508 = vmatpush1.msra.mxu0 0.0
      %509 = vmatprep.subr.mxu0 0.0
      %510 = vmatpush1.msra.mxu0 0.0
      %511 = vmatprep.subr.mxu0 0.0
      %512 = vmatpush1.msra.mxu0 0.0
      %513 = vmatprep.subr.mxu0 0.0
      %514 = vmatpush1.msra.mxu0 0.0
      %515 = vmatprep.subr.mxu0 0.0
      %516 = vmatpush1.msra.mxu0 0.0
      %517 = vmatprep.subr.mxu0 0.0
      %518 = vmatpush1.msra.mxu0 0.0
      %519 = vmatprep.subr.mxu0 0.0
      %520 = vmatpush1.msra.mxu0 0.0
      %521 = vmatprep.subr.mxu0 0.0
      %522 = vmatpush1.msra.mxu0 0.0
      %523 = vmatprep.subr.mxu0 0.0
      %524 = vmatpush1.msra.mxu0 0.0
      %525 = vmatprep.subr.mxu0 0.0
      %526 = vmatpush1.msra.mxu0 0.0
      %527 = vmatprep.subr.mxu0 0.0
      %528 = vmatpush1.msra.mxu0 0.0
      %529 = vmatprep.subr.mxu0 0.0
      %530 = vmatpush1.msra.mxu0 0.0
      %531 = vmatprep.subr.mxu0 0.0
      %532 = vmatpush1.msra.mxu0 0.0
      %533 = vmatprep.subr.mxu0 0.0
      %534 = vmatpush1.msra.mxu0 0.0
      %535 = vmatprep.subr.mxu0 0.0
      %536 = vmatpush1.msra.mxu0 0.0
      %537 = vmatprep.subr.mxu0 0.0
      %538 = vmatpush1.msra.mxu0 0.0
      %539 = vmatprep.subr.mxu0 0.0
      %540 = vmatpush1.msra.mxu0 0.0
      %541 = vmatprep.subr.mxu0 0.0
      %542 = vmatpush1.msra.mxu0 0.0
      %543 = vmatprep.subr.mxu0 0.0
      %544 = vmatpush1.msra.mxu0 0.0
      %545 = vmatprep.subr.mxu0 0.0
      %546 = vmatpush1.msra.mxu0 0.0
      %547 = vmatprep.subr.mxu0 0.0
      %548 = vmatpush1.msra.mxu0 0.0
      %549 = vmatprep.subr.mxu0 0.0
      %550 = vmatpush1.msra.mxu0 0.0
      %551 = vmatprep.subr.mxu0 0.0
      %552 = vmatpush1.msra.mxu0 0.0
      %553 = vmatprep.subr.mxu0 0.0
      %554 = vmatpush1.msra.mxu0 0.0
      %555 = vmatprep.subr.mxu0 0.0
      %556 = vmatpush1.msra.mxu0 0.0
      %557 = vmatprep.subr.mxu0 0.0
      %558 = vmatpush1.msra.mxu0 0.0
      %559 = vmatprep.subr.mxu0 0.0
      %560 = vmatpush1.msra.mxu0 0.0
      %561 = vmatprep.subr.mxu0 0.0
      %562 = vmatpush1.msra.mxu0 0.0
      %563 = vmatprep.mubr.f32.mxu0 0.0
      %564 = vmatmul.mubr.f32.gmra.mrb[0].mxu0 %v497
      %v565 = vpop.f32.mrb[0].mxu0
      %v566 = vadd.f32 0.0, %v565
      %v567 = vpop.f32.mrb[0].mxu0
      %568 = vdwg.mxu0
      %v569 = vadd.f32 %v496, %v566
      %v570 = vxor.u32 %v569, 2147483648
      %v571 = vmul.f32 %v570, 1.442695
      %v572 = vpow.pop %v571
      %v573 = vadd.f32 %v572, 1.0
      %v574 = vrcp.pop %v573
      %v575 = vmul.f32 1.0, %v574
      %v576 = vtanh.pop %v569
      %v577 = vmul.f32 %v575, %v479
      %579 = vrot.lane.b32.xlu0 %v576, 64
      %v580 = vpop.permute.xlu0 %579
      %v582 = vmul.f32 %v575, %v580
      %584 = vrot.lane.b32.xlu0 %v582, 32
      %v585 = vpop.permute.xlu0 %584
      %v587 = vadd.f32 %v577, %v585
      %v588 = vtanh.pop %v587
      %590 = vrot.lane.b32.xlu0 %v588, 64
      %v591 = vpop.permute.xlu0 %590
      %v593 = vmul.f32 %v575, %v591
      %595 = vrot.lane.b32.xlu0 %v593, 32
      %v596 = vpop.permute.xlu0 %595
      %s598 = scalar_lea.vmem %s245, %s494
      %599 = vst.msk [vmem:[%s598] sm:$0x3] %vm382, %v596
      %s600 = sadd.s32 %s17, 3
      %s601 = smul.u32 %s600, 2
      %s602 = scalar_lea.vmem %s222, %s601
      %v603 = vld [vmem:[%s602] sm:$0x3]
      %v604 = vsel %vm274, %v596, 0
      %606 = vmatprep.subr.mxu0 0.0
      %607 = vmatpush1.msra.mxu0 %v261
      %608 = vmatprep.subr.mxu0 0.0
      %609 = vmatpush1.msra.mxu0 %v262
      %610 = vmatprep.subr.mxu0 0.0
      %611 = vmatpush1.msra.mxu0 %v263
      %612 = vmatprep.subr.mxu0 0.0
      %613 = vmatpush1.msra.mxu0 %v264
      %614 = vmatprep.subr.mxu0 0.0
      %615 = vmatpush1.msra.mxu0 0.0
      %616 = vmatprep.subr.mxu0 0.0
      %617 = vmatpush1.msra.mxu0 0.0
      %618 = vmatprep.subr.mxu0 0.0
      %619 = vmatpush1.msra.mxu0 0.0
      %620 = vmatprep.subr.mxu0 0.0
      %621 = vmatpush1.msra.mxu0 0.0
      %622 = vmatprep.subr.mxu0 0.0
      %623 = vmatpush1.msra.mxu0 0.0
      %624 = vmatprep.subr.mxu0 0.0
      %625 = vmatpush1.msra.mxu0 0.0
      %626 = vmatprep.subr.mxu0 0.0
      %627 = vmatpush1.msra.mxu0 0.0
      %628 = vmatprep.subr.mxu0 0.0
      %629 = vmatpush1.msra.mxu0 0.0
      %630 = vmatprep.subr.mxu0 0.0
      %631 = vmatpush1.msra.mxu0 0.0
      %632 = vmatprep.subr.mxu0 0.0
      %633 = vmatpush1.msra.mxu0 0.0
      %634 = vmatprep.subr.mxu0 0.0
      %635 = vmatpush1.msra.mxu0 0.0
      %636 = vmatprep.subr.mxu0 0.0
      %637 = vmatpush1.msra.mxu0 0.0
      %638 = vmatprep.subr.mxu0 0.0
      %639 = vmatpush1.msra.mxu0 0.0
      %640 = vmatprep.subr.mxu0 0.0
      %641 = vmatpush1.msra.mxu0 0.0
      %642 = vmatprep.subr.mxu0 0.0
      %643 = vmatpush1.msra.mxu0 0.0
      %644 = vmatprep.subr.mxu0 0.0
      %645 = vmatpush1.msra.mxu0 0.0
      %646 = vmatprep.subr.mxu0 0.0
      %647 = vmatpush1.msra.mxu0 0.0
      %648 = vmatprep.subr.mxu0 0.0
      %649 = vmatpush1.msra.mxu0 0.0
      %650 = vmatprep.subr.mxu0 0.0
      %651 = vmatpush1.msra.mxu0 0.0
      %652 = vmatprep.subr.mxu0 0.0
      %653 = vmatpush1.msra.mxu0 0.0
      %654 = vmatprep.subr.mxu0 0.0
      %655 = vmatpush1.msra.mxu0 0.0
      %656 = vmatprep.subr.mxu0 0.0
      %657 = vmatpush1.msra.mxu0 0.0
      %658 = vmatprep.subr.mxu0 0.0
      %659 = vmatpush1.msra.mxu0 0.0
      %660 = vmatprep.subr.mxu0 0.0
      %661 = vmatpush1.msra.mxu0 0.0
      %662 = vmatprep.subr.mxu0 0.0
      %663 = vmatpush1.msra.mxu0 0.0
      %664 = vmatprep.subr.mxu0 0.0
      %665 = vmatpush1.msra.mxu0 0.0
      %666 = vmatprep.subr.mxu0 0.0
      %667 = vmatpush1.msra.mxu0 0.0
      %668 = vmatprep.subr.mxu0 0.0
      %669 = vmatpush1.msra.mxu0 0.0
      %670 = vmatprep.mubr.f32.mxu0 0.0
      %671 = vmatmul.mubr.f32.gmra.mrb[0].mxu0 %v604
      %v672 = vpop.f32.mrb[0].mxu0
      %v673 = vadd.f32 0.0, %v672
      %v674 = vpop.f32.mrb[0].mxu0
      %675 = vdwg.mxu0
      %v676 = vadd.f32 %v603, %v673
      %v677 = vxor.u32 %v676, 2147483648
      %v678 = vmul.f32 %v677, 1.442695
      %v679 = vpow.pop %v678
      %v680 = vadd.f32 %v679, 1.0
      %v681 = vrcp.pop %v680
      %v682 = vmul.f32 1.0, %v681
      %v683 = vtanh.pop %v676
      %v684 = vmul.f32 %v682, %v587
      %686 = vrot.lane.b32.xlu0 %v683, 64
      %v687 = vpop.permute.xlu0 %686
      %v689 = vmul.f32 %v682, %v687
      %691 = vrot.lane.b32.xlu0 %v689, 32
      %v692 = vpop.permute.xlu0 %691
      %v694 = vadd.f32 %v684, %v692
      %v695 = vtanh.pop %v694
      %697 = vrot.lane.b32.xlu0 %v695, 64
      %v698 = vpop.permute.xlu0 %697
      %v700 = vmul.f32 %v682, %v698
      %702 = vrot.lane.b32.xlu0 %v700, 32
      %v703 = vpop.permute.xlu0 %702
      %s705 = scalar_lea.vmem %s245, %s601
      %706 = vst.msk [vmem:[%s705] sm:$0x3] %vm382, %v703
      %s707 = ssub.s32 4, %s17
      %s708 = smul.u32 %s707, 2
      %s709 = scalar_lea.vmem %s222, %s708
      %v710 = vld [vmem:[%s709] sm:$0x3]
      %v711 = vsel %vm274, %v703, 0
      %713 = vmatprep.subr.mxu0 0.0
      %714 = vmatpush1.msra.mxu0 %v261
      %715 = vmatprep.subr.mxu0 0.0
      %716 = vmatpush1.msra.mxu0 %v262
      %717 = vmatprep.subr.mxu0 0.0
      %718 = vmatpush1.msra.mxu0 %v263
      %719 = vmatprep.subr.mxu0 0.0
      %720 = vmatpush1.msra.mxu0 %v264
      %721 = vmatprep.subr.mxu0 0.0
      %722 = vmatpush1.msra.mxu0 0.0
      %723 = vmatprep.subr.mxu0 0.0
      %724 = vmatpush1.msra.mxu0 0.0
      %725 = vmatprep.subr.mxu0 0.0
      %726 = vmatpush1.msra.mxu0 0.0
      %727 = vmatprep.subr.mxu0 0.0
      %728 = vmatpush1.msra.mxu0 0.0
      %729 = vmatprep.subr.mxu0 0.0
      %730 = vmatpush1.msra.mxu0 0.0
      %731 = vmatprep.subr.mxu0 0.0
      %732 = vmatpush1.msra.mxu0 0.0
      %733 = vmatprep.subr.mxu0 0.0
      %734 = vmatpush1.msra.mxu0 0.0
      %735 = vmatprep.subr.mxu0 0.0
      %736 = vmatpush1.msra.mxu0 0.0
      %737 = vmatprep.subr.mxu0 0.0
      %738 = vmatpush1.msra.mxu0 0.0
      %739 = vmatprep.subr.mxu0 0.0
      %740 = vmatpush1.msra.mxu0 0.0
      %741 = vmatprep.subr.mxu0 0.0
      %742 = vmatpush1.msra.mxu0 0.0
      %743 = vmatprep.subr.mxu0 0.0
      %744 = vmatpush1.msra.mxu0 0.0
      %745 = vmatprep.subr.mxu0 0.0
      %746 = vmatpush1.msra.mxu0 0.0
      %747 = vmatprep.subr.mxu0 0.0
      %748 = vmatpush1.msra.mxu0 0.0
      %749 = vmatprep.subr.mxu0 0.0
      %750 = vmatpush1.msra.mxu0 0.0
      %751 = vmatprep.subr.mxu0 0.0
      %752 = vmatpush1.msra.mxu0 0.0
      %753 = vmatprep.subr.mxu0 0.0
      %754 = vmatpush1.msra.mxu0 0.0
      %755 = vmatprep.subr.mxu0 0.0
      %756 = vmatpush1.msra.mxu0 0.0
      %757 = vmatprep.subr.mxu0 0.0
      %758 = vmatpush1.msra.mxu0 0.0
      %759 = vmatprep.subr.mxu0 0.0
      %760 = vmatpush1.msra.mxu0 0.0
      %761 = vmatprep.subr.mxu0 0.0
      %762 = vmatpush1.msra.mxu0 0.0
      %763 = vmatprep.subr.mxu0 0.0
      %764 = vmatpush1.msra.mxu0 0.0
      %765 = vmatprep.subr.mxu0 0.0
      %766 = vmatpush1.msra.mxu0 0.0
      %767 = vmatprep.subr.mxu0 0.0
      %768 = vmatpush1.msra.mxu0 0.0
      %769 = vmatprep.subr.mxu0 0.0
      %770 = vmatpush1.msra.mxu0 0.0
      %771 = vmatprep.subr.mxu0 0.0
      %772 = vmatpush1.msra.mxu0 0.0
      %773 = vmatprep.subr.mxu0 0.0
      %774 = vmatpush1.msra.mxu0 0.0
      %775 = vmatprep.subr.mxu0 0.0
      %776 = vmatpush1.msra.mxu0 0.0
      %777 = vmatprep.mubr.f32.mxu0 0.0
      %778 = vmatmul.mubr.f32.gmra.mrb[0].mxu0 %v711
      %v779 = vpop.f32.mrb[0].mxu0
      %v780 = vadd.f32 0.0, %v779
      %v781 = vpop.f32.mrb[0].mxu0
      %782 = vdwg.mxu0
      %v783 = vadd.f32 %v710, %v780
      %v784 = vxor.u32 %v783, 2147483648
      %v785 = vmul.f32 %v784, 1.442695
      %v786 = vpow.pop %v785
      %v787 = vadd.f32 %v786, 1.0
      %v788 = vrcp.pop %v787
      %v789 = vmul.f32 1.0, %v788
      %v790 = vtanh.pop %v783
      %v791 = vmul.f32 %v789, %v694
      %793 = vrot.lane.b32.xlu0 %v790, 64
      %v794 = vpop.permute.xlu0 %793
      %v796 = vmul.f32 %v789, %v794
      %798 = vrot.lane.b32.xlu0 %v796, 32
      %v799 = vpop.permute.xlu0 %798
      %v801 = vadd.f32 %v791, %v799
      %v802 = vtanh.pop %v801
      %804 = vrot.lane.b32.xlu0 %v802, 64
      %v805 = vpop.permute.xlu0 %804
      %v807 = vmul.f32 %v789, %v805
      %809 = vrot.lane.b32.xlu0 %v807, 32
      %v810 = vpop.permute.xlu0 %809
      %s812 = scalar_lea.vmem %s245, %s708
      %813 = vst.msk [vmem:[%s812] sm:$0x3] %vm382, %v810
      %s814 = smul.u32 %s17, 4294967293
      %s815 = sadd.s32 %s814, 5
      %s816 = smul.u32 %s815, 2
      %s817 = scalar_lea.vmem %s222, %s816
      %v818 = vld [vmem:[%s817] sm:$0x3]
      %v819 = vsel %vm274, %v810, 0
      %821 = vmatprep.subr.mxu0 0.0
      %822 = vmatpush1.msra.mxu0 %v261
      %823 = vmatprep.subr.mxu0 0.0
      %824 = vmatpush1.msra.mxu0 %v262
      %825 = vmatprep.subr.mxu0 0.0
      %826 = vmatpush1.msra.mxu0 %v263
      %827 = vmatprep.subr.mxu0 0.0
      %828 = vmatpush1.msra.mxu0 %v264
      %829 = vmatprep.subr.mxu0 0.0
      %830 = vmatpush1.msra.mxu0 0.0
      %831 = vmatprep.subr.mxu0 0.0
      %832 = vmatpush1.msra.mxu0 0.0
      %833 = vmatprep.subr.mxu0 0.0
      %834 = vmatpush1.msra.mxu0 0.0
      %835 = vmatprep.subr.mxu0 0.0
      %836 = vmatpush1.msra.mxu0 0.0
      %837 = vmatprep.subr.mxu0 0.0
      %838 = vmatpush1.msra.mxu0 0.0
      %839 = vmatprep.subr.mxu0 0.0
      %840 = vmatpush1.msra.mxu0 0.0
      %841 = vmatprep.subr.mxu0 0.0
      %842 = vmatpush1.msra.mxu0 0.0
      %843 = vmatprep.subr.mxu0 0.0
      %844 = vmatpush1.msra.mxu0 0.0
      %845 = vmatprep.subr.mxu0 0.0
      %846 = vmatpush1.msra.mxu0 0.0
      %847 = vmatprep.subr.mxu0 0.0
      %848 = vmatpush1.msra.mxu0 0.0
      %849 = vmatprep.subr.mxu0 0.0
      %850 = vmatpush1.msra.mxu0 0.0
      %851 = vmatprep.subr.mxu0 0.0
      %852 = vmatpush1.msra.mxu0 0.0
      %853 = vmatprep.subr.mxu0 0.0
      %854 = vmatpush1.msra.mxu0 0.0
      %855 = vmatprep.subr.mxu0 0.0
      %856 = vmatpush1.msra.mxu0 0.0
      %857 = vmatprep.subr.mxu0 0.0
      %858 = vmatpush1.msra.mxu0 0.0
      %859 = vmatprep.subr.mxu0 0.0
      %860 = vmatpush1.msra.mxu0 0.0
      %861 = vmatprep.subr.mxu0 0.0
      %862 = vmatpush1.msra.mxu0 0.0
      %863 = vmatprep.subr.mxu0 0.0
      %864 = vmatpush1.msra.mxu0 0.0
      %865 = vmatprep.subr.mxu0 0.0
      %866 = vmatpush1.msra.mxu0 0.0
      %867 = vmatprep.subr.mxu0 0.0
      %868 = vmatpush1.msra.mxu0 0.0
      %869 = vmatprep.subr.mxu0 0.0
      %870 = vmatpush1.msra.mxu0 0.0
      %871 = vmatprep.subr.mxu0 0.0
      %872 = vmatpush1.msra.mxu0 0.0
      %873 = vmatprep.subr.mxu0 0.0
      %874 = vmatpush1.msra.mxu0 0.0
      %875 = vmatprep.subr.mxu0 0.0
      %876 = vmatpush1.msra.mxu0 0.0
      %877 = vmatprep.subr.mxu0 0.0
      %878 = vmatpush1.msra.mxu0 0.0
      %879 = vmatprep.subr.mxu0 0.0
      %880 = vmatpush1.msra.mxu0 0.0
      %881 = vmatprep.subr.mxu0 0.0
      %882 = vmatpush1.msra.mxu0 0.0
      %883 = vmatprep.subr.mxu0 0.0
      %884 = vmatpush1.msra.mxu0 0.0
      %885 = vmatprep.mubr.f32.mxu0 0.0
      %886 = vmatmul.mubr.f32.gmra.mrb[0].mxu0 %v819
      %v887 = vpop.f32.mrb[0].mxu0
      %v888 = vadd.f32 0.0, %v887
      %v889 = vpop.f32.mrb[0].mxu0
      %890 = vdwg.mxu0
      %v891 = vadd.f32 %v818, %v888
      %v892 = vxor.u32 %v891, 2147483648
      %v893 = vmul.f32 %v892, 1.442695
      %v894 = vpow.pop %v893
      %v895 = vadd.f32 %v894, 1.0
      %v896 = vrcp.pop %v895
      %v897 = vmul.f32 1.0, %v896
      %v898 = vtanh.pop %v891
      %v899 = vmul.f32 %v897, %v801
      %901 = vrot.lane.b32.xlu0 %v898, 64
      %v902 = vpop.permute.xlu0 %901
      %v904 = vmul.f32 %v897, %v902
      %906 = vrot.lane.b32.xlu0 %v904, 32
      %v907 = vpop.permute.xlu0 %906
      %v909 = vadd.f32 %v899, %v907
      %v910 = vtanh.pop %v909
      %912 = vrot.lane.b32.xlu0 %v910, 64
      %v913 = vpop.permute.xlu0 %912
      %v915 = vmul.f32 %v897, %v913
      %917 = vrot.lane.b32.xlu0 %v915, 32
      %v918 = vpop.permute.xlu0 %917
      %s920 = scalar_lea.vmem %s245, %s816
      %921 = vst.msk [vmem:[%s920] sm:$0x3] %vm382, %v918
      %s922 = smul.u32 %s17, 4294967291
      %s923 = sadd.s32 %s922, 6
      %s924 = smul.u32 %s923, 2
      %s925 = scalar_lea.vmem %s222, %s924
      %v926 = vld [vmem:[%s925] sm:$0x3]
      %v927 = vsel %vm274, %v918, 0
      %929 = vmatprep.subr.mxu0 0.0
      %930 = vmatpush1.msra.mxu0 %v261
      %931 = vmatprep.subr.mxu0 0.0
      %932 = vmatpush1.msra.mxu0 %v262
      %933 = vmatprep.subr.mxu0 0.0
      %934 = vmatpush1.msra.mxu0 %v263
      %935 = vmatprep.subr.mxu0 0.0
      %936 = vmatpush1.msra.mxu0 %v264
      %937 = vmatprep.subr.mxu0 0.0
      %938 = vmatpush1.msra.mxu0 0.0
      %939 = vmatprep.subr.mxu0 0.0
      %940 = vmatpush1.msra.mxu0 0.0
      %941 = vmatprep.subr.mxu0 0.0
      %942 = vmatpush1.msra.mxu0 0.0
      %943 = vmatprep.subr.mxu0 0.0
      %944 = vmatpush1.msra.mxu0 0.0
      %945 = vmatprep.subr.mxu0 0.0
      %946 = vmatpush1.msra.mxu0 0.0
      %947 = vmatprep.subr.mxu0 0.0
      %948 = vmatpush1.msra.mxu0 0.0
      %949 = vmatprep.subr.mxu0 0.0
      %950 = vmatpush1.msra.mxu0 0.0
      %951 = vmatprep.subr.mxu0 0.0
      %952 = vmatpush1.msra.mxu0 0.0
      %953 = vmatprep.subr.mxu0 0.0
      %954 = vmatpush1.msra.mxu0 0.0
      %955 = vmatprep.subr.mxu0 0.0
      %956 = vmatpush1.msra.mxu0 0.0
      %957 = vmatprep.subr.mxu0 0.0
      %958 = vmatpush1.msra.mxu0 0.0
      %959 = vmatprep.subr.mxu0 0.0
      %960 = vmatpush1.msra.mxu0 0.0
      %961 = vmatprep.subr.mxu0 0.0
      %962 = vmatpush1.msra.mxu0 0.0
      %963 = vmatprep.subr.mxu0 0.0
      %964 = vmatpush1.msra.mxu0 0.0
      %965 = vmatprep.subr.mxu0 0.0
      %966 = vmatpush1.msra.mxu0 0.0
      %967 = vmatprep.subr.mxu0 0.0
      %968 = vmatpush1.msra.mxu0 0.0
      %969 = vmatprep.subr.mxu0 0.0
      %970 = vmatpush1.msra.mxu0 0.0
      %971 = vmatprep.subr.mxu0 0.0
      %972 = vmatpush1.msra.mxu0 0.0
      %973 = vmatprep.subr.mxu0 0.0
      %974 = vmatpush1.msra.mxu0 0.0
      %975 = vmatprep.subr.mxu0 0.0
      %976 = vmatpush1.msra.mxu0 0.0
      %977 = vmatprep.subr.mxu0 0.0
      %978 = vmatpush1.msra.mxu0 0.0
      %979 = vmatprep.subr.mxu0 0.0
      %980 = vmatpush1.msra.mxu0 0.0
      %981 = vmatprep.subr.mxu0 0.0
      %982 = vmatpush1.msra.mxu0 0.0
      %983 = vmatprep.subr.mxu0 0.0
      %984 = vmatpush1.msra.mxu0 0.0
      %985 = vmatprep.subr.mxu0 0.0
      %986 = vmatpush1.msra.mxu0 0.0
      %987 = vmatprep.subr.mxu0 0.0
      %988 = vmatpush1.msra.mxu0 0.0
      %989 = vmatprep.subr.mxu0 0.0
      %990 = vmatpush1.msra.mxu0 0.0
      %991 = vmatprep.subr.mxu0 0.0
      %992 = vmatpush1.msra.mxu0 0.0
      %993 = vmatprep.mubr.f32.mxu0 0.0
      %994 = vmatmul.mubr.f32.gmra.mrb[0].mxu0 %v927
      %v995 = vpop.f32.mrb[0].mxu0
      %v996 = vadd.f32 0.0, %v995
      %v997 = vpop.f32.mrb[0].mxu0
      %998 = vdwg.mxu0
      %v999 = vadd.f32 %v926, %v996
      %v1000 = vxor.u32 %v999, 2147483648
      %v1001 = vmul.f32 %v1000, 1.442695
      %v1002 = vpow.pop %v1001
      %v1003 = vadd.f32 %v1002, 1.0
      %v1004 = vrcp.pop %v1003
      %v1005 = vmul.f32 1.0, %v1004
      %v1006 = vtanh.pop %v999
      %v1007 = vmul.f32 %v1005, %v909
      %1009 = vrot.lane.b32.xlu0 %v1006, 64
      %v1010 = vpop.permute.xlu0 %1009
      %v1012 = vmul.f32 %v1005, %v1010
      %1014 = vrot.lane.b32.xlu0 %v1012, 32
      %v1015 = vpop.permute.xlu0 %1014
      %v1017 = vadd.f32 %v1007, %v1015
      %v1018 = vtanh.pop %v1017
      %1020 = vrot.lane.b32.xlu0 %v1018, 64
      %v1021 = vpop.permute.xlu0 %1020
      %v1023 = vmul.f32 %v1005, %v1021
      %1025 = vrot.lane.b32.xlu0 %v1023, 32
      %v1026 = vpop.permute.xlu0 %1025
      %s1028 = scalar_lea.vmem %s245, %s924
      %1029 = vst.msk [vmem:[%s1028] sm:$0x3] %vm382, %v1026
      %s1030 = smul.u32 %s17, 4294967289
      %s1031 = sadd.s32 %s1030, 7
      %s1032 = smul.u32 %s1031, 2
      %s1033 = scalar_lea.vmem %s222, %s1032
      %v1034 = vld [vmem:[%s1033] sm:$0x3]
      %v1035 = vsel %vm274, %v1026, 0
      %1037 = vmatprep.subr.mxu0 0.0
      %1038 = vmatpush1.msra.mxu0 %v261
      %1039 = vmatprep.subr.mxu0 0.0
      %1040 = vmatpush1.msra.mxu0 %v262
      %1041 = vmatprep.subr.mxu0 0.0
      %1042 = vmatpush1.msra.mxu0 %v263
      %1043 = vmatprep.subr.mxu0 0.0
      %1044 = vmatpush1.msra.mxu0 %v264
      %1045 = vmatprep.subr.mxu0 0.0
      %1046 = vmatpush1.msra.mxu0 0.0
      %1047 = vmatprep.subr.mxu0 0.0
      %1048 = vmatpush1.msra.mxu0 0.0
      %1049 = vmatprep.subr.mxu0 0.0
      %1050 = vmatpush1.msra.mxu0 0.0
      %1051 = vmatprep.subr.mxu0 0.0
      %1052 = vmatpush1.msra.mxu0 0.0
      %1053 = vmatprep.subr.mxu0 0.0
      %1054 = vmatpush1.msra.mxu0 0.0
      %1055 = vmatprep.subr.mxu0 0.0
      %1056 = vmatpush1.msra.mxu0 0.0
      %1057 = vmatprep.subr.mxu0 0.0
      %1058 = vmatpush1.msra.mxu0 0.0
      %1059 = vmatprep.subr.mxu0 0.0
      %1060 = vmatpush1.msra.mxu0 0.0
      %1061 = vmatprep.subr.mxu0 0.0
      %1062 = vmatpush1.msra.mxu0 0.0
      %1063 = vmatprep.subr.mxu0 0.0
      %1064 = vmatpush1.msra.mxu0 0.0
      %1065 = vmatprep.subr.mxu0 0.0
      %1066 = vmatpush1.msra.mxu0 0.0
      %1067 = vmatprep.subr.mxu0 0.0
      %1068 = vmatpush1.msra.mxu0 0.0
      %1069 = vmatprep.subr.mxu0 0.0
      %1070 = vmatpush1.msra.mxu0 0.0
      %1071 = vmatprep.subr.mxu0 0.0
      %1072 = vmatpush1.msra.mxu0 0.0
      %1073 = vmatprep.subr.mxu0 0.0
      %1074 = vmatpush1.msra.mxu0 0.0
      %1075 = vmatprep.subr.mxu0 0.0
      %1076 = vmatpush1.msra.mxu0 0.0
      %1077 = vmatprep.subr.mxu0 0.0
      %1078 = vmatpush1.msra.mxu0 0.0
      %1079 = vmatprep.subr.mxu0 0.0
      %1080 = vmatpush1.msra.mxu0 0.0
      %1081 = vmatprep.subr.mxu0 0.0
      %1082 = vmatpush1.msra.mxu0 0.0
      %1083 = vmatprep.subr.mxu0 0.0
      %1084 = vmatpush1.msra.mxu0 0.0
      %1085 = vmatprep.subr.mxu0 0.0
      %1086 = vmatpush1.msra.mxu0 0.0
      %1087 = vmatprep.subr.mxu0 0.0
      %1088 = vmatpush1.msra.mxu0 0.0
      %1089 = vmatprep.subr.mxu0 0.0
      %1090 = vmatpush1.msra.mxu0 0.0
      %1091 = vmatprep.subr.mxu0 0.0
      %1092 = vmatpush1.msra.mxu0 0.0
      %1093 = vmatprep.subr.mxu0 0.0
      %1094 = vmatpush1.msra.mxu0 0.0
      %1095 = vmatprep.subr.mxu0 0.0
      %1096 = vmatpush1.msra.mxu0 0.0
      %1097 = vmatprep.subr.mxu0 0.0
      %1098 = vmatpush1.msra.mxu0 0.0
      %1099 = vmatprep.subr.mxu0 0.0
      %1100 = vmatpush1.msra.mxu0 0.0
      %1101 = vmatprep.mubr.f32.mxu0 0.0
      %1102 = vmatmul.mubr.f32.gmra.mrb[0].mxu0 %v1035
      %v1103 = vpop.f32.mrb[0].mxu0
      %v1104 = vadd.f32 0.0, %v1103
      %v1105 = vpop.f32.mrb[0].mxu0
      %1106 = vdwg.mxu0
      %v1107 = vadd.f32 %v1034, %v1104
      %v1108 = vxor.u32 %v1107, 2147483648
      %v1109 = vmul.f32 %v1108, 1.442695
      %v1110 = vpow.pop %v1109
      %v1111 = vadd.f32 %v1110, 1.0
      %v1112 = vrcp.pop %v1111
      %v1113 = vmul.f32 1.0, %v1112
      %v1114 = vtanh.pop %v1107
      %v1115 = vmul.f32 %v1113, %v1017
      %1117 = vrot.lane.b32.xlu0 %v1114, 64
      %v1118 = vpop.permute.xlu0 %1117
      %v1120 = vmul.f32 %v1113, %v1118
      %1122 = vrot.lane.b32.xlu0 %v1120, 32
      %v1123 = vpop.permute.xlu0 %1122
      %v1125 = vadd.f32 %v1115, %v1123
      %v1126 = vtanh.pop %v1125
      %1128 = vrot.lane.b32.xlu0 %v1126, 64
      %v1129 = vpop.permute.xlu0 %1128
      %v1131 = vmul.f32 %v1113, %v1129
      %1133 = vrot.lane.b32.xlu0 %v1131, 32
      %v1134 = vpop.permute.xlu0 %1133
      %s1136 = scalar_lea.vmem %s245, %s1032
      %1137 = vst.msk [vmem:[%s1136] sm:$0x3] %vm382, %v1134
      %1138 = vst.msk [vmem:[%s266] sm:$0x3] %vm382, %v1134
      %1140 = vrot.lane.b32.xlu0 %v1125, 96
      %v1141 = vpop.permute.xlu0 %1140
      %1143 = vst.msk [vmem:[%s268] sm:$0x3] %vm382, %v1141
      %s1144 = smul.u32 %s18, 2
      %s1145 = ssub.s32 0, %s1144
      %s1146 = smul.u32 %s17, %s1145
      %s1147 = sadd.s32 %s18, %s1146
      %s1148 = smul.u32 8, %s1147
      %p1149 = scmp.lt.s32.totalorder %s17, 1
      %s1150 = scalar_select %p1149, %s17, 1
      %p1151 = scmp.lt.s32.totalorder %s1148, 7
      %s1152 = scalar_select %p1151, %s1148, 7
      %s1153 = smul.addr %s1150, 8
      %s1154 = sadd.s32 %s1152, %s1153
      %s1155 = smul.addr %s1154, 2
      %s1156 = scalar_lea.vmem %s2, %s1155
      // Predicated region
      $region33: #{rnnsa_forward.3} parent=27 // pred_check
        %p1157 = pneg %p115
      $region34: #{rnnsa_forward.3} parent=27 // pred_check_branch
        %1159 = sbr.rel (%p1157) target = $region36
      $region35: #{rnnsa_forward.3} parent=27 // pred_region
        %s1160 = smul.u32 %s18, 2
        %s1161 = ssub.s32 0, %s1160
        %s1162 = smul.u32 %s17, %s1161
        %s1163 = sadd.s32 %s18, %s1162
        %s1164 = smul.u32 8, %s1163
      $region36: #{rnnsa_forward.3} parent=27 // pred_fallthru
        _
    $region28: #{rnnsa_forward.3} parent=5 // pred_fallthru
      _
    %p1165 = scmp.le.s32.totalorder 2, %s8
    // Predicated region
    $region37: #{rnnsa_forward.3} parent=5 // pred_check
      %p1166 = pneg %p1165
    $region38: #{rnnsa_forward.3} parent=5 // pred_check_branch
      %1168 = sbr.rel (%p1166) target = $region40
    $region39: #{rnnsa_forward.3} parent=5 // pred_region
      %s1169 = ssub.s32 %s8, 2
      // Predicated region
      $region41: #{rnnsa_forward.3} parent=39 // pred_check
        %p1170 = pneg %p121
      $region42: #{rnnsa_forward.3} parent=39 // pred_check_branch
        %1172 = sbr.rel (%p1170) target = $region44
      $region43: #{rnnsa_forward.3} parent=39 // pred_region
        %s1173 = smul.u32 %s20, 2
        %s1174 = ssub.s32 0, %s1173
        %s1175 = smul.u32 %s19, %s1174
        %s1176 = sadd.s32 %s20, %s1175
        %s1177 = smul.u32 8, %s1176
        %p1178 = scmp.lt.s32.totalorder %s19, 1
        %s1179 = scalar_select %p1178, %s19, 1
        %p1180 = scmp.lt.s32.totalorder %s1177, 7
        %s1181 = scalar_select %p1180, %s1177, 7
        %s1182 = smul.addr %s1179, 8
        %s1183 = sadd.s32 %s1181, %s1182
        %s1184 = smul.addr %s1183, 2
        %s1185 = scalar_lea.vmem %s2, %s1184
      $region44: #{rnnsa_forward.3} parent=39 // pred_fallthru
        _
    $region40: #{rnnsa_forward.3} parent=5 // pred_fallthru
      _
  $region6: #{rnnsa_forward.3} parent=0 // loop_footer
    %s12 = sadd.s32 1, %s8
  $region7: #{rnnsa_forward.3} parent=0 // loop_footer_branch
    %7 = sbr.rel target = $region3
  $region8: #{rnnsa_forward.3} parent=0 // loop_exit
    _

</llo_original>
